<compile_context>
chip_gen: v7x
topology: tpu7x:2x2x1
jax: 0.10.0
libtpu: 0.0.40
codegen_flags: <defaults>
</compile_context>

<pallas_src>
import jax
import jax.numpy as jnp
from jax import lax
from jax.experimental import pallas as pl
from jax.experimental.pallas import tpu as pltpu


def mlp_kernel(x_ref, w1_ref, b1_ref, w2_ref, b2_ref, wm_ref, o_ref):
    x = x_ref[...]                                          # (bt, 2) f32

    # --- Layer 1: K=2 contraction done on the VPU (broadcasted FMAs), not MXU.
    h1 = (x[:, 0:1] * w1_ref[0:1, :]
          + x[:, 1:2] * w1_ref[1:2, :]
          + b1_ref[...])                                    # (bt, 50)
    h1 = jnp.maximum(h1, 0.0)

    # --- Layer 2: 50x50 dense on the MXU.
    h2 = jnp.dot(h1, w2_ref[...],
                 preferred_element_type=jnp.float32) + b2_ref[...]
    h2 = jnp.maximum(h2, 0.0)                               # (bt, 50)

    # --- Final projection, computed transposed so the store is lane-dense:
    #     (11, 50) x (bt, 50)^T -> (11, bt); last dim = batch tile (%128).
    out_t = lax.dot_general(
        wm_ref[...], h2,
        dimension_numbers=(((0,), (1,)), ((), ())),
        preferred_element_type=jnp.float32)                 # (11, bt)
    o_ref[...] = out_t


def neural_network_forward(x, w1, b1, w2, b2, wm, *, batch_tile=512):
    n, d_in = x.shape
    h = w1.shape[1]            # 50
    d_out = wm.shape[1]        # 11

    # Lane-dense transposed output requires the tile to be a multiple of 128;
    # this also satisfies the f32 sublane (8) granularity for the x block.
    assert batch_tile % 128 == 0, "batch_tile must be a multiple of 128"

    # Pad ragged batch up to a multiple of the tile (padded rows are sliced
    # off after the call; they never affect real outputs).
    n_tiles = pl.cdiv(n, batch_tile)
    n_pad = n_tiles * batch_tile
    if n_pad != n:
        x = jnp.pad(x, ((0, n_pad - n), (0, 0)))

    flops = 2 * n_pad * (d_in * h + h * h + h * d_out)
    bytes_accessed = (n_pad * (d_in + d_out) * 4
                      + (w1.size + b1.size + w2.size + b2.size + wm.size) * 4)

    out_t = pl.pallas_call(
        mlp_kernel,
        out_shape=jax.ShapeDtypeStruct((d_out, n_pad), jnp.float32),
        grid_spec=pltpu.PrefetchScalarGridSpec(
            num_scalar_prefetch=0,
            grid=(n_tiles,),
            in_specs=[
                pl.BlockSpec((batch_tile, d_in), lambda i: (i, 0)),   # x tile
                pl.BlockSpec((d_in, h),          lambda i: (0, 0)),   # W1
                pl.BlockSpec((1, h),             lambda i: (0, 0)),   # b1
                pl.BlockSpec((h, h),             lambda i: (0, 0)),   # W2
                pl.BlockSpec((1, h),             lambda i: (0, 0)),   # b2
                pl.BlockSpec((h, d_out),         lambda i: (0, 0)),   # Wmatrix
            ],
            out_specs=pl.BlockSpec((d_out, batch_tile), lambda i: (0, i)),
        ),
        compiler_params=pltpu.CompilerParams(
            dimension_semantics=("parallel",),
            vmem_limit_bytes=32 * 1024 * 1024),
        cost_estimate=pl.CostEstimate(
            flops=flops, transcendentals=0, bytes_accessed=bytes_accessed),
    )(x, w1, b1, w2, b2, wm)

    # Back to the PyTorch layout (N, 11); drop padded rows.
    return out_t.T[:n, :]


def init_params(key):
    """Deterministic parameter init mirroring the module's shapes.

    nn.Linear(2, 50), nn.Linear(50, 50)  -> stored as (in, out) + bias (1, out)
    Wmatrix ~ N(0, 1) with shape (50, 11)
    """
    k1, k2, k3, k4, k5 = jax.random.split(key, 5)
    # PyTorch default Linear init: U(-1/sqrt(fan_in), 1/sqrt(fan_in))
    lim1 = 1.0 / jnp.sqrt(2.0)
    lim2 = 1.0 / jnp.sqrt(50.0)
    w1 = jax.random.uniform(k1, (2, 50), jnp.float32, -lim1, lim1)
    b1 = jax.random.uniform(k2, (1, 50), jnp.float32, -lim1, lim1)
    w2 = jax.random.uniform(k3, (50, 50), jnp.float32, -lim2, lim2)
    b2 = jax.random.uniform(k4, (1, 50), jnp.float32, -lim2, lim2)
    wm = jax.random.normal(k5, (50, 11), jnp.float32)
    return w1, b1, w2, b2, wm


def reference_forward(x, w1, b1, w2, b2, wm):
    h1 = jnp.maximum(x @ w1 + b1, 0.0)
    h2 = jnp.maximum(h1 @ w2 + b2, 0.0)
    return h2 @ wm


if __name__ == "__main__":
    key = jax.random.PRNGKey(0)
    kx, kp = jax.random.split(key)

    batch = 8                      # small, ragged w.r.t. the 512-row tile
    x = jax.random.normal(kx, (batch, 2), jnp.float32)
    w1, b1, w2, b2, wm = init_params(kp)

    out = neural_network_forward(x, w1, b1, w2, b2, wm)
    out = jax.block_until_ready(out)

    ref = reference_forward(x, w1, b1, w2, b2, wm)
    assert out.shape == (batch, 11), out.shape
    assert jnp.allclose(out, ref, atol=1e-5, rtol=1e-5), "mismatch vs reference"

    # Also exercise a multi-tile, ragged batch to validate the grid path.
    big_n = 1300                   # not a multiple of 512 -> exercises padding
    xb = jax.random.normal(kx, (big_n, 2), jnp.float32)
    outb = jax.block_until_ready(
        neural_network_forward(xb, w1, b1, w2, b2, wm))
    refb = reference_forward(xb, w1, b1, w2, b2, wm)
    assert outb.shape == (big_n, 11), outb.shape
    assert jnp.allclose(outb, refb, atol=1e-4, rtol=1e-4), "mismatch (big batch)"

    print("KERNEL_OK")
</pallas_src>

<mosaic_0001>
module attributes {stable_mosaic.version = 11 : i64} {
  func.func @mlp_kernel(%arg0: i32, %arg1: memref<512x2xf32, #tpu.memory_space<vmem>>, %arg2: memref<2x50xf32, #tpu.memory_space<vmem>>, %arg3: memref<1x50xf32, #tpu.memory_space<vmem>>, %arg4: memref<50x50xf32, #tpu.memory_space<vmem>>, %arg5: memref<1x50xf32, #tpu.memory_space<vmem>>, %arg6: memref<50x11xf32, #tpu.memory_space<vmem>>, %arg7: memref<11x512xf32, #tpu.memory_space<vmem>>) attributes {dimension_semantics = [#tpu.dimension_semantics<parallel>], iteration_bounds = array<i64: 1>, scalar_prefetch = 0 : i64, scratch_operands = 0 : i64, tpu.core_type = #tpu.core_type<tc>, window_params = [{transform_indices = @transform_0, window_bounds = array<i64: 512, 2>}, {pipeline_mode = #tpu.pipeline_mode<synchronous>, transform_indices = @transform_1, window_bounds = array<i64: 2, 50>}, {pipeline_mode = #tpu.pipeline_mode<synchronous>, transform_indices = @transform_2, window_bounds = array<i64: 1, 50>}, {pipeline_mode = #tpu.pipeline_mode<synchronous>, transform_indices = @transform_3, window_bounds = array<i64: 50, 50>}, {pipeline_mode = #tpu.pipeline_mode<synchronous>, transform_indices = @transform_4, window_bounds = array<i64: 1, 50>}, {pipeline_mode = #tpu.pipeline_mode<synchronous>, transform_indices = @transform_5, window_bounds = array<i64: 50, 11>}, {transform_indices = @transform_6, window_bounds = array<i64: 11, 512>}]} {
    %c0 = arith.constant 0 : index
    %c0_0 = arith.constant 0 : index
    %0 = vector.load %arg1[%c0, %c0_0] : memref<512x2xf32, #tpu.memory_space<vmem>>, vector<512x2xf32>
    %1 = vector.extract_strided_slice %0 {offsets = [0, 0], sizes = [512, 1], strides = [1, 1]} : vector<512x2xf32> to vector<512x1xf32>
    %c0_1 = arith.constant 0 : index
    %c0_2 = arith.constant 0 : index
    %2 = vector.load %arg2[%c0_1, %c0_2] : memref<2x50xf32, #tpu.memory_space<vmem>>, vector<1x50xf32>
    %3 = vector.broadcast %1 : vector<512x1xf32> to vector<512x50xf32>
    %4 = vector.broadcast %2 : vector<1x50xf32> to vector<512x50xf32>
    %5 = arith.mulf %3, %4 : vector<512x50xf32>
    %6 = vector.extract_strided_slice %0 {offsets = [0, 1], sizes = [512, 1], strides = [1, 1]} : vector<512x2xf32> to vector<512x1xf32>
    %c1 = arith.constant 1 : index
    %c0_3 = arith.constant 0 : index
    %7 = vector.load %arg2[%c1, %c0_3] : memref<2x50xf32, #tpu.memory_space<vmem>>, vector<1x50xf32>
    %8 = vector.broadcast %6 : vector<512x1xf32> to vector<512x50xf32>
    %9 = vector.broadcast %7 : vector<1x50xf32> to vector<512x50xf32>
    %10 = arith.mulf %8, %9 : vector<512x50xf32>
    %11 = arith.addf %5, %10 : vector<512x50xf32>
    %c0_4 = arith.constant 0 : index
    %c0_5 = arith.constant 0 : index
    %12 = vector.load %arg3[%c0_4, %c0_5] : memref<1x50xf32, #tpu.memory_space<vmem>>, vector<1x50xf32>
    %13 = vector.broadcast %12 : vector<1x50xf32> to vector<512x50xf32>
    %14 = arith.addf %11, %13 : vector<512x50xf32>
    %cst = arith.constant 0.000000e+00 : f32
    %15 = vector.broadcast %cst : f32 to vector<512x50xf32>
    %16 = arith.maximumf %14, %15 : vector<512x50xf32>
    %c0_6 = arith.constant 0 : index
    %c0_7 = arith.constant 0 : index
    %17 = vector.load %arg4[%c0_6, %c0_7] : memref<50x50xf32, #tpu.memory_space<vmem>>, vector<50x50xf32>
    %cst_8 = arith.constant dense<0.000000e+00> : vector<512x50xf32>
    %18 = tpu.matmul %16, %17, %cst_8 {dimension_numbers = #tpu.dot_dimension_numbers<[1], [0], [0], [1], [0, 0, 1, 1], [], []>} : vector<512x50xf32>, vector<50x50xf32>, vector<512x50xf32> -> vector<512x50xf32>
    %c0_9 = arith.constant 0 : index
    %c0_10 = arith.constant 0 : index
    %19 = vector.load %arg5[%c0_9, %c0_10] : memref<1x50xf32, #tpu.memory_space<vmem>>, vector<1x50xf32>
    %20 = vector.broadcast %19 : vector<1x50xf32> to vector<512x50xf32>
    %21 = arith.addf %18, %20 : vector<512x50xf32>
    %cst_11 = arith.constant 0.000000e+00 : f32
    %22 = vector.broadcast %cst_11 : f32 to vector<512x50xf32>
    %23 = arith.maximumf %21, %22 : vector<512x50xf32>
    %c0_12 = arith.constant 0 : index
    %c0_13 = arith.constant 0 : index
    %24 = vector.load %arg6[%c0_12, %c0_13] : memref<50x11xf32, #tpu.memory_space<vmem>>, vector<50x11xf32>
    %cst_14 = arith.constant dense<0.000000e+00> : vector<11x512xf32>
    %25 = tpu.matmul %24, %23, %cst_14 {dimension_numbers = #tpu.dot_dimension_numbers<[0], [1], [1], [0], [0, 1, 1, 0], [], []>} : vector<50x11xf32>, vector<512x50xf32>, vector<11x512xf32> -> vector<11x512xf32>
    %c0_15 = arith.constant 0 : index
    %c0_16 = arith.constant 0 : index
    %26 = vector.load %arg7[%c0_15, %c0_16] : memref<11x512xf32, #tpu.memory_space<vmem>>, vector<11x512xf32>
    tpu.vector_store %arg7[%c0_15, %c0_16], %25 {strides = array<i32>} : memref<11x512xf32, #tpu.memory_space<vmem>>, vector<11x512xf32>,
    return
  }
  func.func @transform_0(%arg0: i32) -> (i32, i32) {
    %c0_i32 = arith.constant 0 : i32
    %c0_i32_0 = arith.constant 0 : i32
    return %arg0, %c0_i32 : i32, i32
  }
  func.func @transform_1(%arg0: i32) -> (i32, i32) {
    %c0_i32 = arith.constant 0 : i32
    %c0_i32_0 = arith.constant 0 : i32
    %c0_i32_1 = arith.constant 0 : i32
    return %c0_i32, %c0_i32_0 : i32, i32
  }
  func.func @transform_2(%arg0: i32) -> (i32, i32) {
    %c0_i32 = arith.constant 0 : i32
    %c0_i32_0 = arith.constant 0 : i32
    %c0_i32_1 = arith.constant 0 : i32
    return %c0_i32, %c0_i32_0 : i32, i32
  }
  func.func @transform_3(%arg0: i32) -> (i32, i32) {
    %c0_i32 = arith.constant 0 : i32
    %c0_i32_0 = arith.constant 0 : i32
    %c0_i32_1 = arith.constant 0 : i32
    return %c0_i32, %c0_i32_0 : i32, i32
  }
  func.func @transform_4(%arg0: i32) -> (i32, i32) {
    %c0_i32 = arith.constant 0 : i32
    %c0_i32_0 = arith.constant 0 : i32
    %c0_i32_1 = arith.constant 0 : i32
    return %c0_i32, %c0_i32_0 : i32, i32
  }
  func.func @transform_5(%arg0: i32) -> (i32, i32) {
    %c0_i32 = arith.constant 0 : i32
    %c0_i32_0 = arith.constant 0 : i32
    %c0_i32_1 = arith.constant 0 : i32
    return %c0_i32, %c0_i32_0 : i32, i32
  }
  func.func @transform_6(%arg0: i32) -> (i32, i32) {
    %c0_i32 = arith.constant 0 : i32
    %c0_i32_0 = arith.constant 0 : i32
    return %c0_i32, %arg0 : i32, i32
  }
}

</mosaic_0001>

<llo_original>
// kernel: tpu_custom_call.1
$region0: #{tpu_custom_call.1}
  #allocation0 [shape = 'u32[]', space=smem, size = 0x4, offset = 0x4, fixed_abs, tag = 'smem constant byte address 0x4 - core index']
  #allocation1 [shape = 'u32[144,128]{1,0:T(1,128)}', space=vmem, size = 0x12000, scoped, tag = 'internal scratch']
  %s0 = inlined_call_operand.vmem [shape: f32[512,2], index: 0, kind: input, shape index: {}]
  %s1 = inlined_call_operand.vmem [shape: f32[2,50], index: 1, kind: input, shape index: {}]
  %s2 = inlined_call_operand.vmem [shape: f32[1,50], index: 2, kind: input, shape index: {}]
  %s3 = inlined_call_operand.vmem [shape: f32[50,50], index: 3, kind: input, shape index: {}]
  %s4 = inlined_call_operand.vmem [shape: f32[1,50], index: 4, kind: input, shape index: {}]
  %s5 = inlined_call_operand.vmem [shape: f32[50,11], index: 5, kind: input, shape index: {}]
  %s6 = inlined_call_operand.hbm [shape: f32[11,512], index: 6, kind: output, shape index: {}]
  %s7 = sld [smem:[#allocation0]]
  $region34: #{tpu_custom_call.1} parent=0
    _
  %s9 = ssub.s32 1, %s7
  %s10 = scalar_select 0, %s9, %s7
  $region1: #{tpu_custom_call.1} parent=0
    #allocation2 [shape = 'u8[32768]{0}', space=vmem, size = 0x8000, scoped, tag = 'output window, operand 0, single buffered']
    #allocation3 [shape = 's32[1]{0}', space=sflag, size = 0x4, scoped, tag = 'scoped memory for tpu_custom_call.1']
    %11 = vsyncpa [#allocation3], 0
    // Predicated region
    $region2: #{tpu_custom_call.1} parent=1 // pred_check
      _
    $region3: #{tpu_custom_call.1} parent=1 // pred_check_branch
      %13 = sbr.rel (0) target = $region5
    $region4: #{tpu_custom_call.1} parent=1 // pred_region
      _
    $region5: #{tpu_custom_call.1} parent=1 // pred_fallthru
      _
    // Predicated region
    $region6: #{tpu_custom_call.1} parent=1 // pred_check
      _
    $region7: #{tpu_custom_call.1} parent=1 // pred_check_branch
      %15 = sbr.rel (0) target = $region9
    $region8: #{tpu_custom_call.1} parent=1 // pred_region
      _
    $region9: #{tpu_custom_call.1} parent=1 // pred_fallthru
      _
    // Predicated region
    $region10: #{tpu_custom_call.1} parent=1 // pred_check
      _
    $region11: #{tpu_custom_call.1} parent=1 // pred_check_branch
      %17 = sbr.rel (0) target = $region13
    $region12: #{tpu_custom_call.1} parent=1 // pred_region
      _
    $region13: #{tpu_custom_call.1} parent=1 // pred_fallthru
      _
    // Predicated region
    $region14: #{tpu_custom_call.1} parent=1 // pred_check
      _
    $region15: #{tpu_custom_call.1} parent=1 // pred_check_branch
      %19 = sbr.rel (0) target = $region17
    $region16: #{tpu_custom_call.1} parent=1 // pred_region
      _
    $region17: #{tpu_custom_call.1} parent=1 // pred_fallthru
      _
    // Predicated region
    $region18: #{tpu_custom_call.1} parent=1 // pred_check
      _
    $region19: #{tpu_custom_call.1} parent=1 // pred_check_branch
      %21 = sbr.rel (0) target = $region21
    $region20: #{tpu_custom_call.1} parent=1 // pred_region
      _
    $region21: #{tpu_custom_call.1} parent=1 // pred_fallthru
      _
    // Predicated region
    $region22: #{tpu_custom_call.1} parent=1 // pred_check
      _
    $region23: #{tpu_custom_call.1} parent=1 // pred_check_branch
      %23 = sbr.rel (0) target = $region25
    $region24: #{tpu_custom_call.1} parent=1 // pred_region
      _
    $region25: #{tpu_custom_call.1} parent=1 // pred_fallthru
      _
    %v24 = vld [vmem:[%s0] sm:$0xff]
    %v25 = vld [vmem:[%s0 + $0x8] sm:$0xff]
    %v26 = vld [vmem:[%s0 + $0x10] sm:$0xff]
    %v27 = vld [vmem:[%s0 + $0x18] sm:$0xff]
    %v28 = vld [vmem:[%s0 + $0x20] sm:$0xff]
    %v29 = vld [vmem:[%s0 + $0x28] sm:$0xff]
    %v30 = vld [vmem:[%s0 + $0x30] sm:$0xff]
    %v31 = vld [vmem:[%s0 + $0x38] sm:$0xff]
    %v32 = vld [vmem:[%s0 + $0x40] sm:$0xff]
    %v33 = vld [vmem:[%s0 + $0x48] sm:$0xff]
    %v34 = vld [vmem:[%s0 + $0x50] sm:$0xff]
    %v35 = vld [vmem:[%s0 + $0x58] sm:$0xff]
    %v36 = vld [vmem:[%s0 + $0x60] sm:$0xff]
    %v37 = vld [vmem:[%s0 + $0x68] sm:$0xff]
    %v38 = vld [vmem:[%s0 + $0x70] sm:$0xff]
    %v39 = vld [vmem:[%s0 + $0x78] sm:$0xff]
    %v40 = vld [vmem:[%s0 + $0x80] sm:$0xff]
    %v41 = vld [vmem:[%s0 + $0x88] sm:$0xff]
    %v42 = vld [vmem:[%s0 + $0x90] sm:$0xff]
    %v43 = vld [vmem:[%s0 + $0x98] sm:$0xff]
    %v44 = vld [vmem:[%s0 + $0xa0] sm:$0xff]
    %v45 = vld [vmem:[%s0 + $0xa8] sm:$0xff]
    %v46 = vld [vmem:[%s0 + $0xb0] sm:$0xff]
    %v47 = vld [vmem:[%s0 + $0xb8] sm:$0xff]
    %v48 = vld [vmem:[%s0 + $0xc0] sm:$0xff]
    %v49 = vld [vmem:[%s0 + $0xc8] sm:$0xff]
    %v50 = vld [vmem:[%s0 + $0xd0] sm:$0xff]
    %v51 = vld [vmem:[%s0 + $0xd8] sm:$0xff]
    %v52 = vld [vmem:[%s0 + $0xe0] sm:$0xff]
    %v53 = vld [vmem:[%s0 + $0xe8] sm:$0xff]
    %v54 = vld [vmem:[%s0 + $0xf0] sm:$0xff]
    %v55 = vld [vmem:[%s0 + $0xf8] sm:$0xff]
    %v56 = vld [vmem:[%s0 + $0x100] sm:$0xff]
    %v57 = vld [vmem:[%s0 + $0x108] sm:$0xff]
    %v58 = vld [vmem:[%s0 + $0x110] sm:$0xff]
    %v59 = vld [vmem:[%s0 + $0x118] sm:$0xff]
    %v60 = vld [vmem:[%s0 + $0x120] sm:$0xff]
    %v61 = vld [vmem:[%s0 + $0x128] sm:$0xff]
    %v62 = vld [vmem:[%s0 + $0x130] sm:$0xff]
    %v63 = vld [vmem:[%s0 + $0x138] sm:$0xff]
    %v64 = vld [vmem:[%s0 + $0x140] sm:$0xff]
    %v65 = vld [vmem:[%s0 + $0x148] sm:$0xff]
    %v66 = vld [vmem:[%s0 + $0x150] sm:$0xff]
    %v67 = vld [vmem:[%s0 + $0x158] sm:$0xff]
    %v68 = vld [vmem:[%s0 + $0x160] sm:$0xff]
    %v69 = vld [vmem:[%s0 + $0x168] sm:$0xff]
    %v70 = vld [vmem:[%s0 + $0x170] sm:$0xff]
    %v71 = vld [vmem:[%s0 + $0x178] sm:$0xff]
    %v72 = vld [vmem:[%s0 + $0x180] sm:$0xff]
    %v73 = vld [vmem:[%s0 + $0x188] sm:$0xff]
    %v74 = vld [vmem:[%s0 + $0x190] sm:$0xff]
    %v75 = vld [vmem:[%s0 + $0x198] sm:$0xff]
    %v76 = vld [vmem:[%s0 + $0x1a0] sm:$0xff]
    %v77 = vld [vmem:[%s0 + $0x1a8] sm:$0xff]
    %v78 = vld [vmem:[%s0 + $0x1b0] sm:$0xff]
    %v79 = vld [vmem:[%s0 + $0x1b8] sm:$0xff]
    %v80 = vld [vmem:[%s0 + $0x1c0] sm:$0xff]
    %v81 = vld [vmem:[%s0 + $0x1c8] sm:$0xff]
    %v82 = vld [vmem:[%s0 + $0x1d0] sm:$0xff]
    %v83 = vld [vmem:[%s0 + $0x1d8] sm:$0xff]
    %v84 = vld [vmem:[%s0 + $0x1e0] sm:$0xff]
    %v85 = vld [vmem:[%s0 + $0x1e8] sm:$0xff]
    %v86 = vld [vmem:[%s0 + $0x1f0] sm:$0xff]
    %v87 = vld [vmem:[%s0 + $0x1f8] sm:$0xff]
    %v88 = vld [vmem:[%s1] sm:$0x1]
    %90 = vset.pattern.permute.xlu0 0
    %91 = vperm.xlu0 %90, %v24
    %v92 = vpop.permute.xlu0 %91
    %95 = vset.pattern.permute.xlu0 0
    %96 = vperm.xlu0 %95, %v25
    %v97 = vpop.permute.xlu0 %96
    %100 = vset.pattern.permute.xlu0 0
    %101 = vperm.xlu0 %100, %v26
    %v102 = vpop.permute.xlu0 %101
    %105 = vset.pattern.permute.xlu0 0
    %106 = vperm.xlu0 %105, %v27
    %v107 = vpop.permute.xlu0 %106
    %110 = vset.pattern.permute.xlu0 0
    %111 = vperm.xlu0 %110, %v28
    %v112 = vpop.permute.xlu0 %111
    %115 = vset.pattern.permute.xlu0 0
    %116 = vperm.xlu0 %115, %v29
    %v117 = vpop.permute.xlu0 %116
    %120 = vset.pattern.permute.xlu0 0
    %121 = vperm.xlu0 %120, %v30
    %v122 = vpop.permute.xlu0 %121
    %125 = vset.pattern.permute.xlu0 0
    %126 = vperm.xlu0 %125, %v31
    %v127 = vpop.permute.xlu0 %126
    %130 = vset.pattern.permute.xlu0 0
    %131 = vperm.xlu0 %130, %v32
    %v132 = vpop.permute.xlu0 %131
    %135 = vset.pattern.permute.xlu0 0
    %136 = vperm.xlu0 %135, %v33
    %v137 = vpop.permute.xlu0 %136
    %140 = vset.pattern.permute.xlu0 0
    %141 = vperm.xlu0 %140, %v34
    %v142 = vpop.permute.xlu0 %141
    %145 = vset.pattern.permute.xlu0 0
    %146 = vperm.xlu0 %145, %v35
    %v147 = vpop.permute.xlu0 %146
    %150 = vset.pattern.permute.xlu0 0
    %151 = vperm.xlu0 %150, %v36
    %v152 = vpop.permute.xlu0 %151
    %155 = vset.pattern.permute.xlu0 0
    %156 = vperm.xlu0 %155, %v37
    %v157 = vpop.permute.xlu0 %156
    %160 = vset.pattern.permute.xlu0 0
    %161 = vperm.xlu0 %160, %v38
    %v162 = vpop.permute.xlu0 %161
    %165 = vset.pattern.permute.xlu0 0
    %166 = vperm.xlu0 %165, %v39
    %v167 = vpop.permute.xlu0 %166
    %170 = vset.pattern.permute.xlu0 0
    %171 = vperm.xlu0 %170, %v40
    %v172 = vpop.permute.xlu0 %171
    %175 = vset.pattern.permute.xlu0 0
    %176 = vperm.xlu0 %175, %v41
    %v177 = vpop.permute.xlu0 %176
    %180 = vset.pattern.permute.xlu0 0
    %181 = vperm.xlu0 %180, %v42
    %v182 = vpop.permute.xlu0 %181
    %185 = vset.pattern.permute.xlu0 0
    %186 = vperm.xlu0 %185, %v43
    %v187 = vpop.permute.xlu0 %186
    %190 = vset.pattern.permute.xlu0 0
    %191 = vperm.xlu0 %190, %v44
    %v192 = vpop.permute.xlu0 %191
    %195 = vset.pattern.permute.xlu0 0
    %196 = vperm.xlu0 %195, %v45
    %v197 = vpop.permute.xlu0 %196
    %200 = vset.pattern.permute.xlu0 0
    %201 = vperm.xlu0 %200, %v46
    %v202 = vpop.permute.xlu0 %201
    %205 = vset.pattern.permute.xlu0 0
    %206 = vperm.xlu0 %205, %v47
    %v207 = vpop.permute.xlu0 %206
    %210 = vset.pattern.permute.xlu0 0
    %211 = vperm.xlu0 %210, %v48
    %v212 = vpop.permute.xlu0 %211
    %215 = vset.pattern.permute.xlu0 0
    %216 = vperm.xlu0 %215, %v49
    %v217 = vpop.permute.xlu0 %216
    %220 = vset.pattern.permute.xlu0 0
    %221 = vperm.xlu0 %220, %v50
    %v222 = vpop.permute.xlu0 %221
    %225 = vset.pattern.permute.xlu0 0
    %226 = vperm.xlu0 %225, %v51
    %v227 = vpop.permute.xlu0 %226
    %230 = vset.pattern.permute.xlu0 0
    %231 = vperm.xlu0 %230, %v52
    %v232 = vpop.permute.xlu0 %231
    %235 = vset.pattern.permute.xlu0 0
    %236 = vperm.xlu0 %235, %v53
    %v237 = vpop.permute.xlu0 %236
    %240 = vset.pattern.permute.xlu0 0
    %241 = vperm.xlu0 %240, %v54
    %v242 = vpop.permute.xlu0 %241
    %245 = vset.pattern.permute.xlu0 0
    %246 = vperm.xlu0 %245, %v55
    %v247 = vpop.permute.xlu0 %246
    %250 = vset.pattern.permute.xlu0 0
    %251 = vperm.xlu0 %250, %v56
    %v252 = vpop.permute.xlu0 %251
    %255 = vset.pattern.permute.xlu0 0
    %256 = vperm.xlu0 %255, %v57
    %v257 = vpop.permute.xlu0 %256
    %260 = vset.pattern.permute.xlu0 0
    %261 = vperm.xlu0 %260, %v58
    %v262 = vpop.permute.xlu0 %261
    %265 = vset.pattern.permute.xlu0 0
    %266 = vperm.xlu0 %265, %v59
    %v267 = vpop.permute.xlu0 %266
    %270 = vset.pattern.permute.xlu0 0
    %271 = vperm.xlu0 %270, %v60
    %v272 = vpop.permute.xlu0 %271
    %275 = vset.pattern.permute.xlu0 0
    %276 = vperm.xlu0 %275, %v61
    %v277 = vpop.permute.xlu0 %276
    %280 = vset.pattern.permute.xlu0 0
    %281 = vperm.xlu0 %280, %v62
    %v282 = vpop.permute.xlu0 %281
    %285 = vset.pattern.permute.xlu0 0
    %286 = vperm.xlu0 %285, %v63
    %v287 = vpop.permute.xlu0 %286
    %290 = vset.pattern.permute.xlu0 0
    %291 = vperm.xlu0 %290, %v64
    %v292 = vpop.permute.xlu0 %291
    %295 = vset.pattern.permute.xlu0 0
    %296 = vperm.xlu0 %295, %v65
    %v297 = vpop.permute.xlu0 %296
    %300 = vset.pattern.permute.xlu0 0
    %301 = vperm.xlu0 %300, %v66
    %v302 = vpop.permute.xlu0 %301
    %305 = vset.pattern.permute.xlu0 0
    %306 = vperm.xlu0 %305, %v67
    %v307 = vpop.permute.xlu0 %306
    %310 = vset.pattern.permute.xlu0 0
    %311 = vperm.xlu0 %310, %v68
    %v312 = vpop.permute.xlu0 %311
    %315 = vset.pattern.permute.xlu0 0
    %316 = vperm.xlu0 %315, %v69
    %v317 = vpop.permute.xlu0 %316
    %320 = vset.pattern.permute.xlu0 0
    %321 = vperm.xlu0 %320, %v70
    %v322 = vpop.permute.xlu0 %321
    %325 = vset.pattern.permute.xlu0 0
    %326 = vperm.xlu0 %325, %v71
    %v327 = vpop.permute.xlu0 %326
    %330 = vset.pattern.permute.xlu0 0
    %331 = vperm.xlu0 %330, %v72
    %v332 = vpop.permute.xlu0 %331
    %335 = vset.pattern.permute.xlu0 0
    %336 = vperm.xlu0 %335, %v73
    %v337 = vpop.permute.xlu0 %336
    %340 = vset.pattern.permute.xlu0 0
    %341 = vperm.xlu0 %340, %v74
    %v342 = vpop.permute.xlu0 %341
    %345 = vset.pattern.permute.xlu0 0
    %346 = vperm.xlu0 %345, %v75
    %v347 = vpop.permute.xlu0 %346
    %350 = vset.pattern.permute.xlu0 0
    %351 = vperm.xlu0 %350, %v76
    %v352 = vpop.permute.xlu0 %351
    %355 = vset.pattern.permute.xlu0 0
    %356 = vperm.xlu0 %355, %v77
    %v357 = vpop.permute.xlu0 %356
    %360 = vset.pattern.permute.xlu0 0
    %361 = vperm.xlu0 %360, %v78
    %v362 = vpop.permute.xlu0 %361
    %365 = vset.pattern.permute.xlu0 0
    %366 = vperm.xlu0 %365, %v79
    %v367 = vpop.permute.xlu0 %366
    %370 = vset.pattern.permute.xlu0 0
    %371 = vperm.xlu0 %370, %v80
    %v372 = vpop.permute.xlu0 %371
    %375 = vset.pattern.permute.xlu0 0
    %376 = vperm.xlu0 %375, %v81
    %v377 = vpop.permute.xlu0 %376
    %380 = vset.pattern.permute.xlu0 0
    %381 = vperm.xlu0 %380, %v82
    %v382 = vpop.permute.xlu0 %381
    %385 = vset.pattern.permute.xlu0 0
    %386 = vperm.xlu0 %385, %v83
    %v387 = vpop.permute.xlu0 %386
    %390 = vset.pattern.permute.xlu0 0
    %391 = vperm.xlu0 %390, %v84
    %v392 = vpop.permute.xlu0 %391
    %395 = vset.pattern.permute.xlu0 0
    %396 = vperm.xlu0 %395, %v85
    %v397 = vpop.permute.xlu0 %396
    %400 = vset.pattern.permute.xlu0 0
    %401 = vperm.xlu0 %400, %v86
    %v402 = vpop.permute.xlu0 %401
    %405 = vset.pattern.permute.xlu0 0
    %406 = vperm.xlu0 %405, %v87
    %v407 = vpop.permute.xlu0 %406
    %v409 = vlaneseq
    %v410 = vshrl.u32 %v409, 7
    %v411 = vsub.s32 0, %v410
    %v412 = vrot.slane %v88, %v411
    %v413 = vmul.f32 %v92, %v412
    %v414 = vmul.f32 %v97, %v412
    %v415 = vmul.f32 %v102, %v412
    %v416 = vmul.f32 %v107, %v412
    %v417 = vmul.f32 %v112, %v412
    %v418 = vmul.f32 %v117, %v412
    %v419 = vmul.f32 %v122, %v412
    %v420 = vmul.f32 %v127, %v412
    %v421 = vmul.f32 %v132, %v412
    %v422 = vmul.f32 %v137, %v412
    %v423 = vmul.f32 %v142, %v412
    %v424 = vmul.f32 %v147, %v412
    %v425 = vmul.f32 %v152, %v412
    %v426 = vmul.f32 %v157, %v412
    %v427 = vmul.f32 %v162, %v412
    %v428 = vmul.f32 %v167, %v412
    %v429 = vmul.f32 %v172, %v412
    %v430 = vmul.f32 %v177, %v412
    %v431 = vmul.f32 %v182, %v412
    %v432 = vmul.f32 %v187, %v412
    %v433 = vmul.f32 %v192, %v412
    %v434 = vmul.f32 %v197, %v412
    %v435 = vmul.f32 %v202, %v412
    %v436 = vmul.f32 %v207, %v412
    %v437 = vmul.f32 %v212, %v412
    %v438 = vmul.f32 %v217, %v412
    %v439 = vmul.f32 %v222, %v412
    %v440 = vmul.f32 %v227, %v412
    %v441 = vmul.f32 %v232, %v412
    %v442 = vmul.f32 %v237, %v412
    %v443 = vmul.f32 %v242, %v412
    %v444 = vmul.f32 %v247, %v412
    %v445 = vmul.f32 %v252, %v412
    %v446 = vmul.f32 %v257, %v412
    %v447 = vmul.f32 %v262, %v412
    %v448 = vmul.f32 %v267, %v412
    %v449 = vmul.f32 %v272, %v412
    %v450 = vmul.f32 %v277, %v412
    %v451 = vmul.f32 %v282, %v412
    %v452 = vmul.f32 %v287, %v412
    %v453 = vmul.f32 %v292, %v412
    %v454 = vmul.f32 %v297, %v412
    %v455 = vmul.f32 %v302, %v412
    %v456 = vmul.f32 %v307, %v412
    %v457 = vmul.f32 %v312, %v412
    %v458 = vmul.f32 %v317, %v412
    %v459 = vmul.f32 %v322, %v412
    %v460 = vmul.f32 %v327, %v412
    %v461 = vmul.f32 %v332, %v412
    %v462 = vmul.f32 %v337, %v412
    %v463 = vmul.f32 %v342, %v412
    %v464 = vmul.f32 %v347, %v412
    %v465 = vmul.f32 %v352, %v412
    %v466 = vmul.f32 %v357, %v412
    %v467 = vmul.f32 %v362, %v412
    %v468 = vmul.f32 %v367, %v412
    %v469 = vmul.f32 %v372, %v412
    %v470 = vmul.f32 %v377, %v412
    %v471 = vmul.f32 %v382, %v412
    %v472 = vmul.f32 %v387, %v412
    %v473 = vmul.f32 %v392, %v412
    %v474 = vmul.f32 %v397, %v412
    %v475 = vmul.f32 %v402, %v412
    %v476 = vmul.f32 %v407, %v412
    %v477 = vld [vmem:[%s1 + $0x1] sm:$0x1]
    %478 = vset.pattern.permute.xlu0 1
    %479 = vperm.xlu0 %478, %v24
    %v480 = vpop.permute.xlu0 %479
    %482 = vset.pattern.permute.xlu0 1
    %483 = vperm.xlu0 %482, %v25
    %v484 = vpop.permute.xlu0 %483
    %486 = vset.pattern.permute.xlu0 1
    %487 = vperm.xlu0 %486, %v26
    %v488 = vpop.permute.xlu0 %487
    %490 = vset.pattern.permute.xlu0 1
    %491 = vperm.xlu0 %490, %v27
    %v492 = vpop.permute.xlu0 %491
    %494 = vset.pattern.permute.xlu0 1
    %495 = vperm.xlu0 %494, %v28
    %v496 = vpop.permute.xlu0 %495
    %498 = vset.pattern.permute.xlu0 1
    %499 = vperm.xlu0 %498, %v29
    %v500 = vpop.permute.xlu0 %499
    %502 = vset.pattern.permute.xlu0 1
    %503 = vperm.xlu0 %502, %v30
    %v504 = vpop.permute.xlu0 %503
    %506 = vset.pattern.permute.xlu0 1
    %507 = vperm.xlu0 %506, %v31
    %v508 = vpop.permute.xlu0 %507
    %510 = vset.pattern.permute.xlu0 1
    %511 = vperm.xlu0 %510, %v32
    %v512 = vpop.permute.xlu0 %511
    %514 = vset.pattern.permute.xlu0 1
    %515 = vperm.xlu0 %514, %v33
    %v516 = vpop.permute.xlu0 %515
    %518 = vset.pattern.permute.xlu0 1
    %519 = vperm.xlu0 %518, %v34
    %v520 = vpop.permute.xlu0 %519
    %522 = vset.pattern.permute.xlu0 1
    %523 = vperm.xlu0 %522, %v35
    %v524 = vpop.permute.xlu0 %523
    %526 = vset.pattern.permute.xlu0 1
    %527 = vperm.xlu0 %526, %v36
    %v528 = vpop.permute.xlu0 %527
    %530 = vset.pattern.permute.xlu0 1
    %531 = vperm.xlu0 %530, %v37
    %v532 = vpop.permute.xlu0 %531
    %534 = vset.pattern.permute.xlu0 1
    %535 = vperm.xlu0 %534, %v38
    %v536 = vpop.permute.xlu0 %535
    %538 = vset.pattern.permute.xlu0 1
    %539 = vperm.xlu0 %538, %v39
    %v540 = vpop.permute.xlu0 %539
    %542 = vset.pattern.permute.xlu0 1
    %543 = vperm.xlu0 %542, %v40
    %v544 = vpop.permute.xlu0 %543
    %546 = vset.pattern.permute.xlu0 1
    %547 = vperm.xlu0 %546, %v41
    %v548 = vpop.permute.xlu0 %547
    %550 = vset.pattern.permute.xlu0 1
    %551 = vperm.xlu0 %550, %v42
    %v552 = vpop.permute.xlu0 %551
    %554 = vset.pattern.permute.xlu0 1
    %555 = vperm.xlu0 %554, %v43
    %v556 = vpop.permute.xlu0 %555
    %558 = vset.pattern.permute.xlu0 1
    %559 = vperm.xlu0 %558, %v44
    %v560 = vpop.permute.xlu0 %559
    %562 = vset.pattern.permute.xlu0 1
    %563 = vperm.xlu0 %562, %v45
    %v564 = vpop.permute.xlu0 %563
    %566 = vset.pattern.permute.xlu0 1
    %567 = vperm.xlu0 %566, %v46
    %v568 = vpop.permute.xlu0 %567
    %570 = vset.pattern.permute.xlu0 1
    %571 = vperm.xlu0 %570, %v47
    %v572 = vpop.permute.xlu0 %571
    %574 = vset.pattern.permute.xlu0 1
    %575 = vperm.xlu0 %574, %v48
    %v576 = vpop.permute.xlu0 %575
    %578 = vset.pattern.permute.xlu0 1
    %579 = vperm.xlu0 %578, %v49
    %v580 = vpop.permute.xlu0 %579
    %582 = vset.pattern.permute.xlu0 1
    %583 = vperm.xlu0 %582, %v50
    %v584 = vpop.permute.xlu0 %583
    %586 = vset.pattern.permute.xlu0 1
    %587 = vperm.xlu0 %586, %v51
    %v588 = vpop.permute.xlu0 %587
    %590 = vset.pattern.permute.xlu0 1
    %591 = vperm.xlu0 %590, %v52
    %v592 = vpop.permute.xlu0 %591
    %594 = vset.pattern.permute.xlu0 1
    %595 = vperm.xlu0 %594, %v53
    %v596 = vpop.permute.xlu0 %595
    %598 = vset.pattern.permute.xlu0 1
    %599 = vperm.xlu0 %598, %v54
    %v600 = vpop.permute.xlu0 %599
    %602 = vset.pattern.permute.xlu0 1
    %603 = vperm.xlu0 %602, %v55
    %v604 = vpop.permute.xlu0 %603
    %606 = vset.pattern.permute.xlu0 1
    %607 = vperm.xlu0 %606, %v56
    %v608 = vpop.permute.xlu0 %607
    %610 = vset.pattern.permute.xlu0 1
    %611 = vperm.xlu0 %610, %v57
    %v612 = vpop.permute.xlu0 %611
    %614 = vset.pattern.permute.xlu0 1
    %615 = vperm.xlu0 %614, %v58
    %v616 = vpop.permute.xlu0 %615
    %618 = vset.pattern.permute.xlu0 1
    %619 = vperm.xlu0 %618, %v59
    %v620 = vpop.permute.xlu0 %619
    %622 = vset.pattern.permute.xlu0 1
    %623 = vperm.xlu0 %622, %v60
    %v624 = vpop.permute.xlu0 %623
    %626 = vset.pattern.permute.xlu0 1
    %627 = vperm.xlu0 %626, %v61
    %v628 = vpop.permute.xlu0 %627
    %630 = vset.pattern.permute.xlu0 1
    %631 = vperm.xlu0 %630, %v62
    %v632 = vpop.permute.xlu0 %631
    %634 = vset.pattern.permute.xlu0 1
    %635 = vperm.xlu0 %634, %v63
    %v636 = vpop.permute.xlu0 %635
    %638 = vset.pattern.permute.xlu0 1
    %639 = vperm.xlu0 %638, %v64
    %v640 = vpop.permute.xlu0 %639
    %642 = vset.pattern.permute.xlu0 1
    %643 = vperm.xlu0 %642, %v65
    %v644 = vpop.permute.xlu0 %643
    %646 = vset.pattern.permute.xlu0 1
    %647 = vperm.xlu0 %646, %v66
    %v648 = vpop.permute.xlu0 %647
    %650 = vset.pattern.permute.xlu0 1
    %651 = vperm.xlu0 %650, %v67
    %v652 = vpop.permute.xlu0 %651
    %654 = vset.pattern.permute.xlu0 1
    %655 = vperm.xlu0 %654, %v68
    %v656 = vpop.permute.xlu0 %655
    %658 = vset.pattern.permute.xlu0 1
    %659 = vperm.xlu0 %658, %v69
    %v660 = vpop.permute.xlu0 %659
    %662 = vset.pattern.permute.xlu0 1
    %663 = vperm.xlu0 %662, %v70
    %v664 = vpop.permute.xlu0 %663
    %666 = vset.pattern.permute.xlu0 1
    %667 = vperm.xlu0 %666, %v71
    %v668 = vpop.permute.xlu0 %667
    %670 = vset.pattern.permute.xlu0 1
    %671 = vperm.xlu0 %670, %v72
    %v672 = vpop.permute.xlu0 %671
    %674 = vset.pattern.permute.xlu0 1
    %675 = vperm.xlu0 %674, %v73
    %v676 = vpop.permute.xlu0 %675
    %678 = vset.pattern.permute.xlu0 1
    %679 = vperm.xlu0 %678, %v74
    %v680 = vpop.permute.xlu0 %679
    %682 = vset.pattern.permute.xlu0 1
    %683 = vperm.xlu0 %682, %v75
    %v684 = vpop.permute.xlu0 %683
    %686 = vset.pattern.permute.xlu0 1
    %687 = vperm.xlu0 %686, %v76
    %v688 = vpop.permute.xlu0 %687
    %690 = vset.pattern.permute.xlu0 1
    %691 = vperm.xlu0 %690, %v77
    %v692 = vpop.permute.xlu0 %691
    %694 = vset.pattern.permute.xlu0 1
    %695 = vperm.xlu0 %694, %v78
    %v696 = vpop.permute.xlu0 %695
    %698 = vset.pattern.permute.xlu0 1
    %699 = vperm.xlu0 %698, %v79
    %v700 = vpop.permute.xlu0 %699
    %702 = vset.pattern.permute.xlu0 1
    %703 = vperm.xlu0 %702, %v80
    %v704 = vpop.permute.xlu0 %703
    %706 = vset.pattern.permute.xlu0 1
    %707 = vperm.xlu0 %706, %v81
    %v708 = vpop.permute.xlu0 %707
    %710 = vset.pattern.permute.xlu0 1
    %711 = vperm.xlu0 %710, %v82
    %v712 = vpop.permute.xlu0 %711
    %714 = vset.pattern.permute.xlu0 1
    %715 = vperm.xlu0 %714, %v83
    %v716 = vpop.permute.xlu0 %715
    %718 = vset.pattern.permute.xlu0 1
    %719 = vperm.xlu0 %718, %v84
    %v720 = vpop.permute.xlu0 %719
    %722 = vset.pattern.permute.xlu0 1
    %723 = vperm.xlu0 %722, %v85
    %v724 = vpop.permute.xlu0 %723
    %726 = vset.pattern.permute.xlu0 1
    %727 = vperm.xlu0 %726, %v86
    %v728 = vpop.permute.xlu0 %727
    %730 = vset.pattern.permute.xlu0 1
    %731 = vperm.xlu0 %730, %v87
    %v732 = vpop.permute.xlu0 %731
    %v734 = vlaneseq
    %v735 = vshrl.u32 %v734, 7
    %v736 = vsub.s32 0, %v735
    %v737 = vrot.slane %v477, %v736
    %v738 = vmul.f32 %v480, %v737
    %v739 = vmul.f32 %v484, %v737
    %v740 = vmul.f32 %v488, %v737
    %v741 = vmul.f32 %v492, %v737
    %v742 = vmul.f32 %v496, %v737
    %v743 = vmul.f32 %v500, %v737
    %v744 = vmul.f32 %v504, %v737
    %v745 = vmul.f32 %v508, %v737
    %v746 = vmul.f32 %v512, %v737
    %v747 = vmul.f32 %v516, %v737
    %v748 = vmul.f32 %v520, %v737
    %v749 = vmul.f32 %v524, %v737
    %v750 = vmul.f32 %v528, %v737
    %v751 = vmul.f32 %v532, %v737
    %v752 = vmul.f32 %v536, %v737
    %v753 = vmul.f32 %v540, %v737
    %v754 = vmul.f32 %v544, %v737
    %v755 = vmul.f32 %v548, %v737
    %v756 = vmul.f32 %v552, %v737
    %v757 = vmul.f32 %v556, %v737
    %v758 = vmul.f32 %v560, %v737
    %v759 = vmul.f32 %v564, %v737
    %v760 = vmul.f32 %v568, %v737
    %v761 = vmul.f32 %v572, %v737
    %v762 = vmul.f32 %v576, %v737
    %v763 = vmul.f32 %v580, %v737
    %v764 = vmul.f32 %v584, %v737
    %v765 = vmul.f32 %v588, %v737
    %v766 = vmul.f32 %v592, %v737
    %v767 = vmul.f32 %v596, %v737
    %v768 = vmul.f32 %v600, %v737
    %v769 = vmul.f32 %v604, %v737
    %v770 = vmul.f32 %v608, %v737
    %v771 = vmul.f32 %v612, %v737
    %v772 = vmul.f32 %v616, %v737
    %v773 = vmul.f32 %v620, %v737
    %v774 = vmul.f32 %v624, %v737
    %v775 = vmul.f32 %v628, %v737
    %v776 = vmul.f32 %v632, %v737
    %v777 = vmul.f32 %v636, %v737
    %v778 = vmul.f32 %v640, %v737
    %v779 = vmul.f32 %v644, %v737
    %v780 = vmul.f32 %v648, %v737
    %v781 = vmul.f32 %v652, %v737
    %v782 = vmul.f32 %v656, %v737
    %v783 = vmul.f32 %v660, %v737
    %v784 = vmul.f32 %v664, %v737
    %v785 = vmul.f32 %v668, %v737
    %v786 = vmul.f32 %v672, %v737
    %v787 = vmul.f32 %v676, %v737
    %v788 = vmul.f32 %v680, %v737
    %v789 = vmul.f32 %v684, %v737
    %v790 = vmul.f32 %v688, %v737
    %v791 = vmul.f32 %v692, %v737
    %v792 = vmul.f32 %v696, %v737
    %v793 = vmul.f32 %v700, %v737
    %v794 = vmul.f32 %v704, %v737
    %v795 = vmul.f32 %v708, %v737
    %v796 = vmul.f32 %v712, %v737
    %v797 = vmul.f32 %v716, %v737
    %v798 = vmul.f32 %v720, %v737
    %v799 = vmul.f32 %v724, %v737
    %v800 = vmul.f32 %v728, %v737
    %v801 = vmul.f32 %v732, %v737
    %v802 = vadd.f32 %v413, %v738
    %v803 = vadd.f32 %v414, %v739
    %v804 = vadd.f32 %v415, %v740
    %v805 = vadd.f32 %v416, %v741
    %v806 = vadd.f32 %v417, %v742
    %v807 = vadd.f32 %v418, %v743
    %v808 = vadd.f32 %v419, %v744
    %v809 = vadd.f32 %v420, %v745
    %v810 = vadd.f32 %v421, %v746
    %v811 = vadd.f32 %v422, %v747
    %v812 = vadd.f32 %v423, %v748
    %v813 = vadd.f32 %v424, %v749
    %v814 = vadd.f32 %v425, %v750
    %v815 = vadd.f32 %v426, %v751
    %v816 = vadd.f32 %v427, %v752
    %v817 = vadd.f32 %v428, %v753
    %v818 = vadd.f32 %v429, %v754
    %v819 = vadd.f32 %v430, %v755
    %v820 = vadd.f32 %v431, %v756
    %v821 = vadd.f32 %v432, %v757
    %v822 = vadd.f32 %v433, %v758
    %v823 = vadd.f32 %v434, %v759
    %v824 = vadd.f32 %v435, %v760
    %v825 = vadd.f32 %v436, %v761
    %v826 = vadd.f32 %v437, %v762
    %v827 = vadd.f32 %v438, %v763
    %v828 = vadd.f32 %v439, %v764
    %v829 = vadd.f32 %v440, %v765
    %v830 = vadd.f32 %v441, %v766
    %v831 = vadd.f32 %v442, %v767
    %v832 = vadd.f32 %v443, %v768
    %v833 = vadd.f32 %v444, %v769
    %v834 = vadd.f32 %v445, %v770
    %v835 = vadd.f32 %v446, %v771
    %v836 = vadd.f32 %v447, %v772
    %v837 = vadd.f32 %v448, %v773
    %v838 = vadd.f32 %v449, %v774
    %v839 = vadd.f32 %v450, %v775
    %v840 = vadd.f32 %v451, %v776
    %v841 = vadd.f32 %v452, %v777
    %v842 = vadd.f32 %v453, %v778
    %v843 = vadd.f32 %v454, %v779
    %v844 = vadd.f32 %v455, %v780
    %v845 = vadd.f32 %v456, %v781
    %v846 = vadd.f32 %v457, %v782
    %v847 = vadd.f32 %v458, %v783
    %v848 = vadd.f32 %v459, %v784
    %v849 = vadd.f32 %v460, %v785
    %v850 = vadd.f32 %v461, %v786
    %v851 = vadd.f32 %v462, %v787
    %v852 = vadd.f32 %v463, %v788
    %v853 = vadd.f32 %v464, %v789
    %v854 = vadd.f32 %v465, %v790
    %v855 = vadd.f32 %v466, %v791
    %v856 = vadd.f32 %v467, %v792
    %v857 = vadd.f32 %v468, %v793
    %v858 = vadd.f32 %v469, %v794
    %v859 = vadd.f32 %v470, %v795
    %v860 = vadd.f32 %v471, %v796
    %v861 = vadd.f32 %v472, %v797
    %v862 = vadd.f32 %v473, %v798
    %v863 = vadd.f32 %v474, %v799
    %v864 = vadd.f32 %v475, %v800
    %v865 = vadd.f32 %v476, %v801
    %v866 = vld [vmem:[%s2] sm:$0x1]
    %v868 = vlaneseq
    %v869 = vshrl.u32 %v868, 7
    %v870 = vsub.s32 0, %v869
    %v871 = vrot.slane %v866, %v870
    %v873 = vadd.f32 %v802, %v871
    %v874 = vadd.f32 %v803, %v871
    %v875 = vadd.f32 %v804, %v871
    %v876 = vadd.f32 %v805, %v871
    %v877 = vadd.f32 %v806, %v871
    %v878 = vadd.f32 %v807, %v871
    %v879 = vadd.f32 %v808, %v871
    %v880 = vadd.f32 %v809, %v871
    %v881 = vadd.f32 %v810, %v871
    %v882 = vadd.f32 %v811, %v871
    %v883 = vadd.f32 %v812, %v871
    %v884 = vadd.f32 %v813, %v871
    %v885 = vadd.f32 %v814, %v871
    %v886 = vadd.f32 %v815, %v871
    %v887 = vadd.f32 %v816, %v871
    %v888 = vadd.f32 %v817, %v871
    %v889 = vadd.f32 %v818, %v871
    %v890 = vadd.f32 %v819, %v871
    %v891 = vadd.f32 %v820, %v871
    %v892 = vadd.f32 %v821, %v871
    %v893 = vadd.f32 %v822, %v871
    %v894 = vadd.f32 %v823, %v871
    %v895 = vadd.f32 %v824, %v871
    %v896 = vadd.f32 %v825, %v871
    %v897 = vadd.f32 %v826, %v871
    %v898 = vadd.f32 %v827, %v871
    %v899 = vadd.f32 %v828, %v871
    %v900 = vadd.f32 %v829, %v871
    %v901 = vadd.f32 %v830, %v871
    %v902 = vadd.f32 %v831, %v871
    %v903 = vadd.f32 %v832, %v871
    %v904 = vadd.f32 %v833, %v871
    %v905 = vadd.f32 %v834, %v871
    %v906 = vadd.f32 %v835, %v871
    %v907 = vadd.f32 %v836, %v871
    %v908 = vadd.f32 %v837, %v871
    %v909 = vadd.f32 %v838, %v871
    %v910 = vadd.f32 %v839, %v871
    %v911 = vadd.f32 %v840, %v871
    %v912 = vadd.f32 %v841, %v871
    %v913 = vadd.f32 %v842, %v871
    %v914 = vadd.f32 %v843, %v871
    %v915 = vadd.f32 %v844, %v871
    %v916 = vadd.f32 %v845, %v871
    %v917 = vadd.f32 %v846, %v871
    %v918 = vadd.f32 %v847, %v871
    %v919 = vadd.f32 %v848, %v871
    %v920 = vadd.f32 %v849, %v871
    %v921 = vadd.f32 %v850, %v871
    %v922 = vadd.f32 %v851, %v871
    %v923 = vadd.f32 %v852, %v871
    %v924 = vadd.f32 %v853, %v871
    %v925 = vadd.f32 %v854, %v871
    %v926 = vadd.f32 %v855, %v871
    %v927 = vadd.f32 %v856, %v871
    %v928 = vadd.f32 %v857, %v871
    %v929 = vadd.f32 %v858, %v871
    %v930 = vadd.f32 %v859, %v871
    %v931 = vadd.f32 %v860, %v871
    %v932 = vadd.f32 %v861, %v871
    %v933 = vadd.f32 %v862, %v871
    %v934 = vadd.f32 %v863, %v871
    %v935 = vadd.f32 %v864, %v871
    %v936 = vadd.f32 %v865, %v871
    %v937 = vmax.f32 %v873, 0.0
    %v938 = vmax.f32 %v874, 0.0
    %v939 = vmax.f32 %v875, 0.0
    %v940 = vmax.f32 %v876, 0.0
    %v941 = vmax.f32 %v877, 0.0
    %v942 = vmax.f32 %v878, 0.0
    %v943 = vmax.f32 %v879, 0.0
    %v944 = vmax.f32 %v880, 0.0
    %v945 = vmax.f32 %v881, 0.0
    %v946 = vmax.f32 %v882, 0.0
    %v947 = vmax.f32 %v883, 0.0
    %v948 = vmax.f32 %v884, 0.0
    %v949 = vmax.f32 %v885, 0.0
    %v950 = vmax.f32 %v886, 0.0
    %v951 = vmax.f32 %v887, 0.0
    %v952 = vmax.f32 %v888, 0.0
    %v953 = vmax.f32 %v889, 0.0
    %v954 = vmax.f32 %v890, 0.0
    %v955 = vmax.f32 %v891, 0.0
    %v956 = vmax.f32 %v892, 0.0
    %v957 = vmax.f32 %v893, 0.0
    %v958 = vmax.f32 %v894, 0.0
    %v959 = vmax.f32 %v895, 0.0
    %v960 = vmax.f32 %v896, 0.0
    %v961 = vmax.f32 %v897, 0.0
    %v962 = vmax.f32 %v898, 0.0
    %v963 = vmax.f32 %v899, 0.0
    %v964 = vmax.f32 %v900, 0.0
    %v965 = vmax.f32 %v901, 0.0
    %v966 = vmax.f32 %v902, 0.0
    %v967 = vmax.f32 %v903, 0.0
    %v968 = vmax.f32 %v904, 0.0
    %v969 = vmax.f32 %v905, 0.0
    %v970 = vmax.f32 %v906, 0.0
    %v971 = vmax.f32 %v907, 0.0
    %v972 = vmax.f32 %v908, 0.0
    %v973 = vmax.f32 %v909, 0.0
    %v974 = vmax.f32 %v910, 0.0
    %v975 = vmax.f32 %v911, 0.0
    %v976 = vmax.f32 %v912, 0.0
    %v977 = vmax.f32 %v913, 0.0
    %v978 = vmax.f32 %v914, 0.0
    %v979 = vmax.f32 %v915, 0.0
    %v980 = vmax.f32 %v916, 0.0
    %v981 = vmax.f32 %v917, 0.0
    %v982 = vmax.f32 %v918, 0.0
    %v983 = vmax.f32 %v919, 0.0
    %v984 = vmax.f32 %v920, 0.0
    %v985 = vmax.f32 %v921, 0.0
    %v986 = vmax.f32 %v922, 0.0
    %v987 = vmax.f32 %v923, 0.0
    %v988 = vmax.f32 %v924, 0.0
    %v989 = vmax.f32 %v925, 0.0
    %v990 = vmax.f32 %v926, 0.0
    %v991 = vmax.f32 %v927, 0.0
    %v992 = vmax.f32 %v928, 0.0
    %v993 = vmax.f32 %v929, 0.0
    %v994 = vmax.f32 %v930, 0.0
    %v995 = vmax.f32 %v931, 0.0
    %v996 = vmax.f32 %v932, 0.0
    %v997 = vmax.f32 %v933, 0.0
    %v998 = vmax.f32 %v934, 0.0
    %v999 = vmax.f32 %v935, 0.0
    %v1000 = vmax.f32 %v936, 0.0
    %v1001 = vld [vmem:[%s3] sm:$0xff]
    %v1002 = vld [vmem:[%s3 + $0x8] sm:$0xff]
    %v1003 = vld [vmem:[%s3 + $0x10] sm:$0xff]
    %v1004 = vld [vmem:[%s3 + $0x18] sm:$0xff]
    %v1005 = vld [vmem:[%s3 + $0x20] sm:$0xff]
    %v1006 = vld [vmem:[%s3 + $0x28] sm:$0xff]
    %v1007 = vld [vmem:[%s3 + $0x30] sm:$0x3]
    %v1008 = vld [vmem:[%s4] sm:$0x1]
    %v1010 = vlaneseq
    %v1011 = vshrl.u32 %v1010, 7
    %v1012 = vsub.s32 0, %v1011
    %v1013 = vrot.slane %v1008, %v1012
    %vm1015 = vcmask 408576
    %v1017 = vsel %vm1015, %v937, 0
    %v1020 = vsel %vm1015, %v938, 0
    %v1023 = vsel %vm1015, %v939, 0
    %v1026 = vsel %vm1015, %v940, 0
    %v1029 = vsel %vm1015, %v941, 0
    %v1032 = vsel %vm1015, %v942, 0
    %v1035 = vsel %vm1015, %v943, 0
    %v1038 = vsel %vm1015, %v944, 0
    %v1041 = vsel %vm1015, %v945, 0
    %v1044 = vsel %vm1015, %v946, 0
    %v1047 = vsel %vm1015, %v947, 0
    %v1050 = vsel %vm1015, %v948, 0
    %v1053 = vsel %vm1015, %v949, 0
    %v1056 = vsel %vm1015, %v950, 0
    %v1059 = vsel %vm1015, %v951, 0
    %v1062 = vsel %vm1015, %v952, 0
    %v1065 = vsel %vm1015, %v953, 0
    %v1068 = vsel %vm1015, %v954, 0
    %v1071 = vsel %vm1015, %v955, 0
    %v1074 = vsel %vm1015, %v956, 0
    %v1077 = vsel %vm1015, %v957, 0
    %v1080 = vsel %vm1015, %v958, 0
    %v1083 = vsel %vm1015, %v959, 0
    %v1086 = vsel %vm1015, %v960, 0
    %v1089 = vsel %vm1015, %v961, 0
    %v1092 = vsel %vm1015, %v962, 0
    %v1095 = vsel %vm1015, %v963, 0
    %v1098 = vsel %vm1015, %v964, 0
    %v1101 = vsel %vm1015, %v965, 0
    %v1104 = vsel %vm1015, %v966, 0
    %v1107 = vsel %vm1015, %v967, 0
    %v1110 = vsel %vm1015, %v968, 0
    %v1113 = vsel %vm1015, %v969, 0
    %v1116 = vsel %vm1015, %v970, 0
    %v1119 = vsel %vm1015, %v971, 0
    %v1122 = vsel %vm1015, %v972, 0
    %v1125 = vsel %vm1015, %v973, 0
    %v1128 = vsel %vm1015, %v974, 0
    %v1131 = vsel %vm1015, %v975, 0
    %v1134 = vsel %vm1015, %v976, 0
    %v1137 = vsel %vm1015, %v977, 0
    %v1140 = vsel %vm1015, %v978, 0
    %v1143 = vsel %vm1015, %v979, 0
    %v1146 = vsel %vm1015, %v980, 0
    %v1149 = vsel %vm1015, %v981, 0
    %v1152 = vsel %vm1015, %v982, 0
    %v1155 = vsel %vm1015, %v983, 0
    %v1158 = vsel %vm1015, %v984, 0
    %v1161 = vsel %vm1015, %v985, 0
    %v1164 = vsel %vm1015, %v986, 0
    %v1167 = vsel %vm1015, %v987, 0
    %v1170 = vsel %vm1015, %v988, 0
    %v1173 = vsel %vm1015, %v989, 0
    %v1176 = vsel %vm1015, %v990, 0
    %v1179 = vsel %vm1015, %v991, 0
    %v1182 = vsel %vm1015, %v992, 0
    %v1185 = vsel %vm1015, %v993, 0
    %v1188 = vsel %vm1015, %v994, 0
    %v1191 = vsel %vm1015, %v995, 0
    %v1194 = vsel %vm1015, %v996, 0
    %v1197 = vsel %vm1015, %v997, 0
    %v1200 = vsel %vm1015, %v998, 0
    %v1203 = vsel %vm1015, %v999, 0
    %v1206 = vsel %vm1015, %v1000, 0
    %vm1208 = vcmask 1041408
    %v1210 = vsel %vm1208, %v1007, 0
    %1212 = vmatprep.subr.mxu0 0.0
    %1213 = vmatpush1.msra.mxu0 %v1001
    %1214 = vmatprep.subr.mxu0 0.0
    %1215 = vmatpush1.msra.mxu0 %v1002
    %1216 = vmatprep.subr.mxu0 0.0
    %1217 = vmatpush1.msra.mxu0 %v1003
    %1218 = vmatprep.subr.mxu0 0.0
    %1219 = vmatpush1.msra.mxu0 %v1004
    %1220 = vmatprep.subr.mxu0 0.0
    %1221 = vmatpush1.msra.mxu0 %v1005
    %1222 = vmatprep.subr.mxu0 0.0
    %1223 = vmatpush1.msra.mxu0 %v1006
    %1224 = vmatprep.subr.mxu0 0.0
    %1225 = vmatpush1.msra.mxu0 %v1210
    %1226 = vmatprep.subr.mxu0 0.0
    %1227 = vmatpush1.msra.mxu0 0.0
    %1228 = vmatprep.subr.mxu0 0.0
    %1229 = vmatpush1.msra.mxu0 0.0
    %1230 = vmatprep.subr.mxu0 0.0
    %1231 = vmatpush1.msra.mxu0 0.0
    %1232 = vmatprep.subr.mxu0 0.0
    %1233 = vmatpush1.msra.mxu0 0.0
    %1234 = vmatprep.subr.mxu0 0.0
    %1235 = vmatpush1.msra.mxu0 0.0
    %1236 = vmatprep.subr.mxu0 0.0
    %1237 = vmatpush1.msra.mxu0 0.0
    %1238 = vmatprep.subr.mxu0 0.0
    %1239 = vmatpush1.msra.mxu0 0.0
    %1240 = vmatprep.subr.mxu0 0.0
    %1241 = vmatpush1.msra.mxu0 0.0
    %1242 = vmatprep.subr.mxu0 0.0
    %1243 = vmatpush1.msra.mxu0 0.0
    %1244 = vmatprep.subr.mxu0 0.0
    %1245 = vmatpush1.msra.mxu0 0.0
    %1246 = vmatprep.subr.mxu0 0.0
    %1247 = vmatpush1.msra.mxu0 0.0
    %1248 = vmatprep.subr.mxu0 0.0
    %1249 = vmatpush1.msra.mxu0 0.0
    %1250 = vmatprep.subr.mxu0 0.0
    %1251 = vmatpush1.msra.mxu0 0.0
    %1252 = vmatprep.subr.mxu0 0.0
    %1253 = vmatpush1.msra.mxu0 0.0
    %1254 = vmatprep.subr.mxu0 0.0
    %1255 = vmatpush1.msra.mxu0 0.0
    %1256 = vmatprep.subr.mxu0 0.0
    %1257 = vmatpush1.msra.mxu0 0.0
    %1258 = vmatprep.subr.mxu0 0.0
    %1259 = vmatpush1.msra.mxu0 0.0
    %1260 = vmatprep.subr.mxu0 0.0
    %1261 = vmatpush1.msra.mxu0 0.0
    %1262 = vmatprep.subr.mxu0 0.0
    %1263 = vmatpush1.msra.mxu0 0.0
    %1264 = vmatprep.subr.mxu0 0.0
    %1265 = vmatpush1.msra.mxu0 0.0
    %1266 = vmatprep.subr.mxu0 0.0
    %1267 = vmatpush1.msra.mxu0 0.0
    %1268 = vmatprep.subr.mxu0 0.0
    %1269 = vmatpush1.msra.mxu0 0.0
    %1270 = vmatprep.subr.mxu0 0.0
    %1271 = vmatpush1.msra.mxu0 0.0
    %1272 = vmatprep.subr.mxu0 0.0
    %1273 = vmatpush1.msra.mxu0 0.0
    %1274 = vmatprep.subr.mxu0 0.0
    %1275 = vmatpush1.msra.mxu0 0.0
    %1276 = vmatprep.mubr.f32.mxu0 0.0
    %1277 = vmatmul.mubr.f32.gmra.mrb[0].mxu0 %v1017
    %v1278 = vpop.f32.mrb[0].mxu0
    %v1279 = vadd.f32 %v1013, %v1278
    %v1280 = vpop.f32.mrb[0].mxu0
    %1281 = vmatprep.mubr.f32.mxu0 0.0
    %1282 = vmatmul.mubr.f32.gmra.mrb[0].mxu0 %v1020
    %v1283 = vpop.f32.mrb[0].mxu0
    %v1284 = vadd.f32 %v1013, %v1283
    %v1285 = vpop.f32.mrb[0].mxu0
    %1286 = vmatprep.mubr.f32.mxu0 0.0
    %1287 = vmatmul.mubr.f32.gmra.mrb[0].mxu0 %v1023
    %v1288 = vpop.f32.mrb[0].mxu0
    %v1289 = vadd.f32 %v1013, %v1288
    %v1290 = vpop.f32.mrb[0].mxu0
    %1291 = vmatprep.mubr.f32.mxu0 0.0
    %1292 = vmatmul.mubr.f32.gmra.mrb[0].mxu0 %v1026
    %v1293 = vpop.f32.mrb[0].mxu0
    %v1294 = vadd.f32 %v1013, %v1293
    %v1295 = vpop.f32.mrb[0].mxu0
    %1296 = vmatprep.mubr.f32.mxu0 0.0
    %1297 = vmatmul.mubr.f32.gmra.mrb[0].mxu0 %v1029
    %v1298 = vpop.f32.mrb[0].mxu0
    %v1299 = vadd.f32 %v1013, %v1298
    %v1300 = vpop.f32.mrb[0].mxu0
    %1301 = vmatprep.mubr.f32.mxu0 0.0
    %1302 = vmatmul.mubr.f32.gmra.mrb[0].mxu0 %v1032
    %v1303 = vpop.f32.mrb[0].mxu0
    %v1304 = vadd.f32 %v1013, %v1303
    %v1305 = vpop.f32.mrb[0].mxu0
    %1306 = vmatprep.mubr.f32.mxu0 0.0
    %1307 = vmatmul.mubr.f32.gmra.mrb[0].mxu0 %v1035
    %v1308 = vpop.f32.mrb[0].mxu0
    %v1309 = vadd.f32 %v1013, %v1308
    %v1310 = vpop.f32.mrb[0].mxu0
    %1311 = vmatprep.mubr.f32.mxu0 0.0
    %1312 = vmatmul.mubr.f32.gmra.mrb[0].mxu0 %v1038
    %v1313 = vpop.f32.mrb[0].mxu0
    %v1314 = vadd.f32 %v1013, %v1313
    %v1315 = vpop.f32.mrb[0].mxu0
    %1316 = vmatprep.mubr.f32.mxu0 0.0
    %1317 = vmatmul.mubr.f32.gmra.mrb[0].mxu0 %v1041
    %v1318 = vpop.f32.mrb[0].mxu0
    %v1319 = vadd.f32 %v1013, %v1318
    %v1320 = vpop.f32.mrb[0].mxu0
    %1321 = vmatprep.mubr.f32.mxu0 0.0
    %1322 = vmatmul.mubr.f32.gmra.mrb[0].mxu0 %v1044
    %v1323 = vpop.f32.mrb[0].mxu0
    %v1324 = vadd.f32 %v1013, %v1323
    %v1325 = vpop.f32.mrb[0].mxu0
    %1326 = vmatprep.mubr.f32.mxu0 0.0
    %1327 = vmatmul.mubr.f32.gmra.mrb[0].mxu0 %v1047
    %v1328 = vpop.f32.mrb[0].mxu0
    %v1329 = vadd.f32 %v1013, %v1328
    %v1330 = vpop.f32.mrb[0].mxu0
    %1331 = vmatprep.mubr.f32.mxu0 0.0
    %1332 = vmatmul.mubr.f32.gmra.mrb[0].mxu0 %v1050
    %v1333 = vpop.f32.mrb[0].mxu0
    %v1334 = vadd.f32 %v1013, %v1333
    %v1335 = vpop.f32.mrb[0].mxu0
    %1336 = vmatprep.mubr.f32.mxu0 0.0
    %1337 = vmatmul.mubr.f32.gmra.mrb[0].mxu0 %v1053
    %v1338 = vpop.f32.mrb[0].mxu0
    %v1339 = vadd.f32 %v1013, %v1338
    %v1340 = vpop.f32.mrb[0].mxu0
    %1341 = vmatprep.mubr.f32.mxu0 0.0
    %1342 = vmatmul.mubr.f32.gmra.mrb[0].mxu0 %v1056
    %v1343 = vpop.f32.mrb[0].mxu0
    %v1344 = vadd.f32 %v1013, %v1343
    %v1345 = vpop.f32.mrb[0].mxu0
    %1346 = vmatprep.mubr.f32.mxu0 0.0
    %1347 = vmatmul.mubr.f32.gmra.mrb[0].mxu0 %v1059
    %v1348 = vpop.f32.mrb[0].mxu0
    %v1349 = vadd.f32 %v1013, %v1348
    %v1350 = vpop.f32.mrb[0].mxu0
    %1351 = vmatprep.mubr.f32.mxu0 0.0
    %1352 = vmatmul.mubr.f32.gmra.mrb[0].mxu0 %v1062
    %v1353 = vpop.f32.mrb[0].mxu0
    %v1354 = vadd.f32 %v1013, %v1353
    %v1355 = vpop.f32.mrb[0].mxu0
    %1356 = vmatprep.mubr.f32.mxu0 0.0
    %1357 = vmatmul.mubr.f32.gmra.mrb[0].mxu0 %v1065
    %v1358 = vpop.f32.mrb[0].mxu0
    %v1359 = vadd.f32 %v1013, %v1358
    %v1360 = vpop.f32.mrb[0].mxu0
    %1361 = vmatprep.mubr.f32.mxu0 0.0
    %1362 = vmatmul.mubr.f32.gmra.mrb[0].mxu0 %v1068
    %v1363 = vpop.f32.mrb[0].mxu0
    %v1364 = vadd.f32 %v1013, %v1363
    %v1365 = vpop.f32.mrb[0].mxu0
    %1366 = vmatprep.mubr.f32.mxu0 0.0
    %1367 = vmatmul.mubr.f32.gmra.mrb[0].mxu0 %v1071
    %v1368 = vpop.f32.mrb[0].mxu0
    %v1369 = vadd.f32 %v1013, %v1368
    %v1370 = vpop.f32.mrb[0].mxu0
    %1371 = vmatprep.mubr.f32.mxu0 0.0
    %1372 = vmatmul.mubr.f32.gmra.mrb[0].mxu0 %v1074
    %v1373 = vpop.f32.mrb[0].mxu0
    %v1374 = vadd.f32 %v1013, %v1373
    %v1375 = vpop.f32.mrb[0].mxu0
    %1376 = vmatprep.mubr.f32.mxu0 0.0
    %1377 = vmatmul.mubr.f32.gmra.mrb[0].mxu0 %v1077
    %v1378 = vpop.f32.mrb[0].mxu0
    %v1379 = vadd.f32 %v1013, %v1378
    %v1380 = vpop.f32.mrb[0].mxu0
    %1381 = vmatprep.mubr.f32.mxu0 0.0
    %1382 = vmatmul.mubr.f32.gmra.mrb[0].mxu0 %v1080
    %v1383 = vpop.f32.mrb[0].mxu0
    %v1384 = vadd.f32 %v1013, %v1383
    %v1385 = vpop.f32.mrb[0].mxu0
    %1386 = vmatprep.mubr.f32.mxu0 0.0
    %1387 = vmatmul.mubr.f32.gmra.mrb[0].mxu0 %v1083
    %v1388 = vpop.f32.mrb[0].mxu0
    %v1389 = vadd.f32 %v1013, %v1388
    %v1390 = vpop.f32.mrb[0].mxu0
    %1391 = vmatprep.mubr.f32.mxu0 0.0
    %1392 = vmatmul.mubr.f32.gmra.mrb[0].mxu0 %v1086
    %v1393 = vpop.f32.mrb[0].mxu0
    %v1394 = vadd.f32 %v1013, %v1393
    %v1395 = vpop.f32.mrb[0].mxu0
    %1396 = vmatprep.mubr.f32.mxu0 0.0
    %1397 = vmatmul.mubr.f32.gmra.mrb[0].mxu0 %v1089
    %v1398 = vpop.f32.mrb[0].mxu0
    %v1399 = vadd.f32 %v1013, %v1398
    %v1400 = vpop.f32.mrb[0].mxu0
    %1401 = vmatprep.mubr.f32.mxu0 0.0
    %1402 = vmatmul.mubr.f32.gmra.mrb[0].mxu0 %v1092
    %v1403 = vpop.f32.mrb[0].mxu0
    %v1404 = vadd.f32 %v1013, %v1403
    %v1405 = vpop.f32.mrb[0].mxu0
    %1406 = vmatprep.mubr.f32.mxu0 0.0
    %1407 = vmatmul.mubr.f32.gmra.mrb[0].mxu0 %v1095
    %v1408 = vpop.f32.mrb[0].mxu0
    %v1409 = vadd.f32 %v1013, %v1408
    %v1410 = vpop.f32.mrb[0].mxu0
    %1411 = vmatprep.mubr.f32.mxu0 0.0
    %1412 = vmatmul.mubr.f32.gmra.mrb[0].mxu0 %v1098
    %v1413 = vpop.f32.mrb[0].mxu0
    %v1414 = vadd.f32 %v1013, %v1413
    %v1415 = vpop.f32.mrb[0].mxu0
    %1416 = vmatprep.mubr.f32.mxu0 0.0
    %1417 = vmatmul.mubr.f32.gmra.mrb[0].mxu0 %v1101
    %v1418 = vpop.f32.mrb[0].mxu0
    %v1419 = vadd.f32 %v1013, %v1418
    %v1420 = vpop.f32.mrb[0].mxu0
    %1421 = vmatprep.mubr.f32.mxu0 0.0
    %1422 = vmatmul.mubr.f32.gmra.mrb[0].mxu0 %v1104
    %v1423 = vpop.f32.mrb[0].mxu0
    %v1424 = vadd.f32 %v1013, %v1423
    %v1425 = vpop.f32.mrb[0].mxu0
    %1426 = vmatprep.mubr.f32.mxu0 0.0
    %1427 = vmatmul.mubr.f32.gmra.mrb[0].mxu0 %v1107
    %v1428 = vpop.f32.mrb[0].mxu0
    %v1429 = vadd.f32 %v1013, %v1428
    %v1430 = vpop.f32.mrb[0].mxu0
    %1431 = vmatprep.mubr.f32.mxu0 0.0
    %1432 = vmatmul.mubr.f32.gmra.mrb[0].mxu0 %v1110
    %v1433 = vpop.f32.mrb[0].mxu0
    %v1434 = vadd.f32 %v1013, %v1433
    %v1435 = vpop.f32.mrb[0].mxu0
    %1436 = vmatprep.mubr.f32.mxu0 0.0
    %1437 = vmatmul.mubr.f32.gmra.mrb[0].mxu0 %v1113
    %v1438 = vpop.f32.mrb[0].mxu0
    %v1439 = vadd.f32 %v1013, %v1438
    %v1440 = vpop.f32.mrb[0].mxu0
    %1441 = vmatprep.mubr.f32.mxu0 0.0
    %1442 = vmatmul.mubr.f32.gmra.mrb[0].mxu0 %v1116
    %v1443 = vpop.f32.mrb[0].mxu0
    %v1444 = vadd.f32 %v1013, %v1443
    %v1445 = vpop.f32.mrb[0].mxu0
    %1446 = vmatprep.mubr.f32.mxu0 0.0
    %1447 = vmatmul.mubr.f32.gmra.mrb[0].mxu0 %v1119
    %v1448 = vpop.f32.mrb[0].mxu0
    %v1449 = vadd.f32 %v1013, %v1448
    %v1450 = vpop.f32.mrb[0].mxu0
    %1451 = vmatprep.mubr.f32.mxu0 0.0
    %1452 = vmatmul.mubr.f32.gmra.mrb[0].mxu0 %v1122
    %v1453 = vpop.f32.mrb[0].mxu0
    %v1454 = vadd.f32 %v1013, %v1453
    %v1455 = vpop.f32.mrb[0].mxu0
    %1456 = vmatprep.mubr.f32.mxu0 0.0
    %1457 = vmatmul.mubr.f32.gmra.mrb[0].mxu0 %v1125
    %v1458 = vpop.f32.mrb[0].mxu0
    %v1459 = vadd.f32 %v1013, %v1458
    %v1460 = vpop.f32.mrb[0].mxu0
    %1461 = vmatprep.mubr.f32.mxu0 0.0
    %1462 = vmatmul.mubr.f32.gmra.mrb[0].mxu0 %v1128
    %v1463 = vpop.f32.mrb[0].mxu0
    %v1464 = vadd.f32 %v1013, %v1463
    %v1465 = vpop.f32.mrb[0].mxu0
    %1466 = vmatprep.mubr.f32.mxu0 0.0
    %1467 = vmatmul.mubr.f32.gmra.mrb[0].mxu0 %v1131
    %v1468 = vpop.f32.mrb[0].mxu0
    %v1469 = vadd.f32 %v1013, %v1468
    %v1470 = vpop.f32.mrb[0].mxu0
    %1471 = vmatprep.mubr.f32.mxu0 0.0
    %1472 = vmatmul.mubr.f32.gmra.mrb[0].mxu0 %v1134
    %v1473 = vpop.f32.mrb[0].mxu0
    %v1474 = vadd.f32 %v1013, %v1473
    %v1475 = vpop.f32.mrb[0].mxu0
    %1476 = vmatprep.mubr.f32.mxu0 0.0
    %1477 = vmatmul.mubr.f32.gmra.mrb[0].mxu0 %v1137
    %v1478 = vpop.f32.mrb[0].mxu0
    %v1479 = vadd.f32 %v1013, %v1478
    %v1480 = vpop.f32.mrb[0].mxu0
    %1481 = vmatprep.mubr.f32.mxu0 0.0
    %1482 = vmatmul.mubr.f32.gmra.mrb[0].mxu0 %v1140
    %v1483 = vpop.f32.mrb[0].mxu0
    %v1484 = vadd.f32 %v1013, %v1483
    %v1485 = vpop.f32.mrb[0].mxu0
    %1486 = vmatprep.mubr.f32.mxu0 0.0
    %1487 = vmatmul.mubr.f32.gmra.mrb[0].mxu0 %v1143
    %v1488 = vpop.f32.mrb[0].mxu0
    %v1489 = vadd.f32 %v1013, %v1488
    %v1490 = vpop.f32.mrb[0].mxu0
    %1491 = vmatprep.mubr.f32.mxu0 0.0
    %1492 = vmatmul.mubr.f32.gmra.mrb[0].mxu0 %v1146
    %v1493 = vpop.f32.mrb[0].mxu0
    %v1494 = vadd.f32 %v1013, %v1493
    %v1495 = vpop.f32.mrb[0].mxu0
    %1496 = vmatprep.mubr.f32.mxu0 0.0
    %1497 = vmatmul.mubr.f32.gmra.mrb[0].mxu0 %v1149
    %v1498 = vpop.f32.mrb[0].mxu0
    %v1499 = vadd.f32 %v1013, %v1498
    %v1500 = vpop.f32.mrb[0].mxu0
    %1501 = vmatprep.mubr.f32.mxu0 0.0
    %1502 = vmatmul.mubr.f32.gmra.mrb[0].mxu0 %v1152
    %v1503 = vpop.f32.mrb[0].mxu0
    %v1504 = vadd.f32 %v1013, %v1503
    %v1505 = vpop.f32.mrb[0].mxu0
    %1506 = vmatprep.mubr.f32.mxu0 0.0
    %1507 = vmatmul.mubr.f32.gmra.mrb[0].mxu0 %v1155
    %v1508 = vpop.f32.mrb[0].mxu0
    %v1509 = vadd.f32 %v1013, %v1508
    %v1510 = vpop.f32.mrb[0].mxu0
    %1511 = vmatprep.mubr.f32.mxu0 0.0
    %1512 = vmatmul.mubr.f32.gmra.mrb[0].mxu0 %v1158
    %v1513 = vpop.f32.mrb[0].mxu0
    %v1514 = vadd.f32 %v1013, %v1513
    %v1515 = vpop.f32.mrb[0].mxu0
    %1516 = vmatprep.mubr.f32.mxu0 0.0
    %1517 = vmatmul.mubr.f32.gmra.mrb[0].mxu0 %v1161
    %v1518 = vpop.f32.mrb[0].mxu0
    %v1519 = vadd.f32 %v1013, %v1518
    %v1520 = vpop.f32.mrb[0].mxu0
    %1521 = vmatprep.mubr.f32.mxu0 0.0
    %1522 = vmatmul.mubr.f32.gmra.mrb[0].mxu0 %v1164
    %v1523 = vpop.f32.mrb[0].mxu0
    %v1524 = vadd.f32 %v1013, %v1523
    %v1525 = vpop.f32.mrb[0].mxu0
    %1526 = vmatprep.mubr.f32.mxu0 0.0
    %1527 = vmatmul.mubr.f32.gmra.mrb[0].mxu0 %v1167
    %v1528 = vpop.f32.mrb[0].mxu0
    %v1529 = vadd.f32 %v1013, %v1528
    %v1530 = vpop.f32.mrb[0].mxu0
    %1531 = vmatprep.mubr.f32.mxu0 0.0
    %1532 = vmatmul.mubr.f32.gmra.mrb[0].mxu0 %v1170
    %v1533 = vpop.f32.mrb[0].mxu0
    %v1534 = vadd.f32 %v1013, %v1533
    %v1535 = vpop.f32.mrb[0].mxu0
    %1536 = vmatprep.mubr.f32.mxu0 0.0
    %1537 = vmatmul.mubr.f32.gmra.mrb[0].mxu0 %v1173
    %v1538 = vpop.f32.mrb[0].mxu0
    %v1539 = vadd.f32 %v1013, %v1538
    %v1540 = vpop.f32.mrb[0].mxu0
    %1541 = vmatprep.mubr.f32.mxu0 0.0
    %1542 = vmatmul.mubr.f32.gmra.mrb[0].mxu0 %v1176
    %v1543 = vpop.f32.mrb[0].mxu0
    %v1544 = vadd.f32 %v1013, %v1543
    %v1545 = vpop.f32.mrb[0].mxu0
    %1546 = vmatprep.mubr.f32.mxu0 0.0
    %1547 = vmatmul.mubr.f32.gmra.mrb[0].mxu0 %v1179
    %v1548 = vpop.f32.mrb[0].mxu0
    %v1549 = vadd.f32 %v1013, %v1548
    %v1550 = vpop.f32.mrb[0].mxu0
    %1551 = vmatprep.mubr.f32.mxu0 0.0
    %1552 = vmatmul.mubr.f32.gmra.mrb[0].mxu0 %v1182
    %v1553 = vpop.f32.mrb[0].mxu0
    %v1554 = vadd.f32 %v1013, %v1553
    %v1555 = vpop.f32.mrb[0].mxu0
    %1556 = vmatprep.mubr.f32.mxu0 0.0
    %1557 = vmatmul.mubr.f32.gmra.mrb[0].mxu0 %v1185
    %v1558 = vpop.f32.mrb[0].mxu0
    %v1559 = vadd.f32 %v1013, %v1558
    %v1560 = vpop.f32.mrb[0].mxu0
    %1561 = vmatprep.mubr.f32.mxu0 0.0
    %1562 = vmatmul.mubr.f32.gmra.mrb[0].mxu0 %v1188
    %v1563 = vpop.f32.mrb[0].mxu0
    %v1564 = vadd.f32 %v1013, %v1563
    %v1565 = vpop.f32.mrb[0].mxu0
    %1566 = vmatprep.mubr.f32.mxu0 0.0
    %1567 = vmatmul.mubr.f32.gmra.mrb[0].mxu0 %v1191
    %v1568 = vpop.f32.mrb[0].mxu0
    %v1569 = vadd.f32 %v1013, %v1568
    %v1570 = vpop.f32.mrb[0].mxu0
    %1571 = vmatprep.mubr.f32.mxu0 0.0
    %1572 = vmatmul.mubr.f32.gmra.mrb[0].mxu0 %v1194
    %v1573 = vpop.f32.mrb[0].mxu0
    %v1574 = vadd.f32 %v1013, %v1573
    %v1575 = vpop.f32.mrb[0].mxu0
    %1576 = vmatprep.mubr.f32.mxu0 0.0
    %1577 = vmatmul.mubr.f32.gmra.mrb[0].mxu0 %v1197
    %v1578 = vpop.f32.mrb[0].mxu0
    %v1579 = vadd.f32 %v1013, %v1578
    %v1580 = vpop.f32.mrb[0].mxu0
    %1581 = vmatprep.mubr.f32.mxu0 0.0
    %1582 = vmatmul.mubr.f32.gmra.mrb[0].mxu0 %v1200
    %v1583 = vpop.f32.mrb[0].mxu0
    %v1584 = vadd.f32 %v1013, %v1583
    %v1585 = vpop.f32.mrb[0].mxu0
    %1586 = vmatprep.mubr.f32.mxu0 0.0
    %1587 = vmatmul.mubr.f32.gmra.mrb[0].mxu0 %v1203
    %v1588 = vpop.f32.mrb[0].mxu0
    %v1589 = vadd.f32 %v1013, %v1588
    %v1590 = vpop.f32.mrb[0].mxu0
    %1591 = vmatprep.mubr.f32.mxu0 0.0
    %1592 = vmatmul.mubr.f32.gmra.mrb[0].mxu0 %v1206
    %v1593 = vpop.f32.mrb[0].mxu0
    %v1594 = vadd.f32 %v1013, %v1593
    %v1595 = vpop.f32.mrb[0].mxu0
    %1596 = vdwg.mxu0
    %v1597 = vmax.f32 %v1279, 0.0
    %v1598 = vmax.f32 %v1284, 0.0
    %v1599 = vmax.f32 %v1289, 0.0
    %v1600 = vmax.f32 %v1294, 0.0
    %v1601 = vmax.f32 %v1299, 0.0
    %v1602 = vmax.f32 %v1304, 0.0
    %v1603 = vmax.f32 %v1309, 0.0
    %v1604 = vmax.f32 %v1314, 0.0
    %v1605 = vmax.f32 %v1319, 0.0
    %v1606 = vmax.f32 %v1324, 0.0
    %v1607 = vmax.f32 %v1329, 0.0
    %v1608 = vmax.f32 %v1334, 0.0
    %v1609 = vmax.f32 %v1339, 0.0
    %v1610 = vmax.f32 %v1344, 0.0
    %v1611 = vmax.f32 %v1349, 0.0
    %v1612 = vmax.f32 %v1354, 0.0
    %v1613 = vmax.f32 %v1359, 0.0
    %v1614 = vmax.f32 %v1364, 0.0
    %v1615 = vmax.f32 %v1369, 0.0
    %v1616 = vmax.f32 %v1374, 0.0
    %v1617 = vmax.f32 %v1379, 0.0
    %v1618 = vmax.f32 %v1384, 0.0
    %v1619 = vmax.f32 %v1389, 0.0
    %v1620 = vmax.f32 %v1394, 0.0
    %v1621 = vmax.f32 %v1399, 0.0
    %v1622 = vmax.f32 %v1404, 0.0
    %v1623 = vmax.f32 %v1409, 0.0
    %v1624 = vmax.f32 %v1414, 0.0
    %v1625 = vmax.f32 %v1419, 0.0
    %v1626 = vmax.f32 %v1424, 0.0
    %v1627 = vmax.f32 %v1429, 0.0
    %v1628 = vmax.f32 %v1434, 0.0
    %v1629 = vmax.f32 %v1439, 0.0
    %v1630 = vmax.f32 %v1444, 0.0
    %v1631 = vmax.f32 %v1449, 0.0
    %v1632 = vmax.f32 %v1454, 0.0
    %v1633 = vmax.f32 %v1459, 0.0
    %v1634 = vmax.f32 %v1464, 0.0
    %v1635 = vmax.f32 %v1469, 0.0
    %v1636 = vmax.f32 %v1474, 0.0
    %v1637 = vmax.f32 %v1479, 0.0
    %v1638 = vmax.f32 %v1484, 0.0
    %v1639 = vmax.f32 %v1489, 0.0
    %v1640 = vmax.f32 %v1494, 0.0
    %v1641 = vmax.f32 %v1499, 0.0
    %v1642 = vmax.f32 %v1504, 0.0
    %v1643 = vmax.f32 %v1509, 0.0
    %v1644 = vmax.f32 %v1514, 0.0
    %v1645 = vmax.f32 %v1519, 0.0
    %v1646 = vmax.f32 %v1524, 0.0
    %v1647 = vmax.f32 %v1529, 0.0
    %v1648 = vmax.f32 %v1534, 0.0
    %v1649 = vmax.f32 %v1539, 0.0
    %v1650 = vmax.f32 %v1544, 0.0
    %v1651 = vmax.f32 %v1549, 0.0
    %v1652 = vmax.f32 %v1554, 0.0
    %v1653 = vmax.f32 %v1559, 0.0
    %v1654 = vmax.f32 %v1564, 0.0
    %v1655 = vmax.f32 %v1569, 0.0
    %v1656 = vmax.f32 %v1574, 0.0
    %v1657 = vmax.f32 %v1579, 0.0
    %v1658 = vmax.f32 %v1584, 0.0
    %v1659 = vmax.f32 %v1589, 0.0
    %v1660 = vmax.f32 %v1594, 0.0
    %v1661 = vld [vmem:[%s5] sm:$0xff]
    %v1662 = vld [vmem:[%s5 + $0x8] sm:$0xff]
    %v1663 = vld [vmem:[%s5 + $0x10] sm:$0xff]
    %v1664 = vld [vmem:[%s5 + $0x18] sm:$0xff]
    %v1665 = vld [vmem:[%s5 + $0x20] sm:$0xff]
    %v1666 = vld [vmem:[%s5 + $0x28] sm:$0xff]
    %v1667 = vld [vmem:[%s5 + $0x30] sm:$0x3]
    %1668 = vxpose.xlu0.b32.start [1/16] %v1661, 128
    %1669 = vxpose.xlu0.b32.cont [2/16] %v1662, 128
    %1670 = vxpose.xlu0.b32.cont [3/16] %v1663, 128
    %1671 = vxpose.xlu0.b32.cont [4/16] %v1664, 128
    %1672 = vxpose.xlu0.b32.cont [5/16] %v1665, 128
    %1673 = vxpose.xlu0.b32.cont [6/16] %v1666, 128
    %1674 = vxpose.xlu0.b32.cont [7/16] %v1667, 128
    %1675 = vxpose.xlu0.b32.cont [8/16] 0.0, 128
    %1676 = vxpose.xlu0.b32.cont [9/16] 0.0, 128
    %1677 = vxpose.xlu0.b32.cont [10/16] 0.0, 128
    %1678 = vxpose.xlu0.b32.cont [11/16] 0.0, 128
    %1679 = vxpose.xlu0.b32.cont [12/16] 0.0, 128
    %1680 = vxpose.xlu0.b32.cont [13/16] 0.0, 128
    %1681 = vxpose.xlu0.b32.cont [14/16] 0.0, 128
    %1682 = vxpose.xlu0.b32.cont [15/16] 0.0, 128
    %1683 = vxpose.xlu0.b32.end [16/16] 0.0, 128
    %v1684 = vpop.trf.xlu0
    %v1685 = vpop.trf.xlu0
    %v1686 = vpop.trf.xlu0
    %v1687 = vpop.trf.xlu0
    %v1688 = vpop.trf.xlu0
    %v1689 = vpop.trf.xlu0
    %v1690 = vpop.trf.xlu0
    %v1691 = vpop.trf.xlu0
    %v1692 = vpop.trf.xlu0
    %v1693 = vpop.trf.xlu0
    %v1694 = vpop.trf.xlu0
    %v1695 = vpop.trf.xlu0
    %v1696 = vpop.trf.xlu0
    %v1697 = vpop.trf.xlu0
    %v1698 = vpop.trf.xlu0
    %v1699 = vpop.trf.xlu0
    %v1701 = vsel %vm1015, %v1684, 0
    %v1704 = vsel %vm1015, %v1685, 0
    %v1707 = vsel %vm1015, %v1597, 0
    %v1710 = vsel %vm1015, %v1598, 0
    %v1713 = vsel %vm1015, %v1599, 0
    %v1716 = vsel %vm1015, %v1600, 0
    %v1719 = vsel %vm1015, %v1601, 0
    %v1722 = vsel %vm1015, %v1602, 0
    %v1725 = vsel %vm1015, %v1603, 0
    %v1728 = vsel %vm1015, %v1604, 0
    %v1731 = vsel %vm1015, %v1605, 0
    %v1734 = vsel %vm1015, %v1606, 0
    %v1737 = vsel %vm1015, %v1607, 0
    %v1740 = vsel %vm1015, %v1608, 0
    %v1743 = vsel %vm1015, %v1609, 0
    %v1746 = vsel %vm1015, %v1610, 0
    %v1749 = vsel %vm1015, %v1611, 0
    %v1752 = vsel %vm1015, %v1612, 0
    %v1755 = vsel %vm1015, %v1613, 0
    %v1758 = vsel %vm1015, %v1614, 0
    %v1761 = vsel %vm1015, %v1615, 0
    %v1764 = vsel %vm1015, %v1616, 0
    %v1767 = vsel %vm1015, %v1617, 0
    %v1770 = vsel %vm1015, %v1618, 0
    %v1773 = vsel %vm1015, %v1619, 0
    %v1776 = vsel %vm1015, %v1620, 0
    %v1779 = vsel %vm1015, %v1621, 0
    %v1782 = vsel %vm1015, %v1622, 0
    %v1785 = vsel %vm1015, %v1623, 0
    %v1788 = vsel %vm1015, %v1624, 0
    %v1791 = vsel %vm1015, %v1625, 0
    %v1794 = vsel %vm1015, %v1626, 0
    %v1797 = vsel %vm1015, %v1627, 0
    %v1800 = vsel %vm1015, %v1628, 0
    %v1803 = vsel %vm1015, %v1629, 0
    %v1806 = vsel %vm1015, %v1630, 0
    %v1809 = vsel %vm1015, %v1631, 0
    %v1812 = vsel %vm1015, %v1632, 0
    %v1815 = vsel %vm1015, %v1633, 0
    %v1818 = vsel %vm1015, %v1634, 0
    %v1821 = vsel %vm1015, %v1635, 0
    %v1824 = vsel %vm1015, %v1636, 0
    %v1827 = vsel %vm1015, %v1637, 0
    %v1830 = vsel %vm1015, %v1638, 0
    %v1833 = vsel %vm1015, %v1639, 0
    %v1836 = vsel %vm1015, %v1640, 0
    %v1839 = vsel %vm1015, %v1641, 0
    %v1842 = vsel %vm1015, %v1642, 0
    %v1845 = vsel %vm1015, %v1643, 0
    %v1848 = vsel %vm1015, %v1644, 0
    %v1851 = vsel %vm1015, %v1645, 0
    %v1854 = vsel %vm1015, %v1646, 0
    %v1857 = vsel %vm1015, %v1647, 0
    %v1860 = vsel %vm1015, %v1648, 0
    %v1863 = vsel %vm1015, %v1649, 0
    %v1866 = vsel %vm1015, %v1650, 0
    %v1869 = vsel %vm1015, %v1651, 0
    %v1872 = vsel %vm1015, %v1652, 0
    %v1875 = vsel %vm1015, %v1653, 0
    %v1878 = vsel %vm1015, %v1654, 0
    %v1881 = vsel %vm1015, %v1655, 0
    %v1884 = vsel %vm1015, %v1656, 0
    %v1887 = vsel %vm1015, %v1657, 0
    %v1890 = vsel %vm1015, %v1658, 0
    %v1893 = vsel %vm1015, %v1659, 0
    %v1896 = vsel %vm1015, %v1660, 0
    %1898 = vmatprep.subr.mxu0 0.0
    %1899 = vmatpush1.xpose.msra.mxu0 %v1707
    %1900 = vmatprep.subr.mxu0 0.0
    %1901 = vmatpush1.xpose.msra.mxu0 %v1710
    %1902 = vmatprep.subr.mxu0 0.0
    %1903 = vmatpush1.xpose.msra.mxu0 %v1713
    %1904 = vmatprep.subr.mxu0 0.0
    %1905 = vmatpush1.xpose.msra.mxu0 %v1716
    %1906 = vmatprep.subr.mxu0 0.0
    %1907 = vmatpush1.xpose.msra.mxu0 %v1719
    %1908 = vmatprep.subr.mxu0 0.0
    %1909 = vmatpush1.xpose.msra.mxu0 %v1722
    %1910 = vmatprep.subr.mxu0 0.0
    %1911 = vmatpush1.xpose.msra.mxu0 %v1725
    %1912 = vmatprep.subr.mxu0 0.0
    %1913 = vmatpush1.xpose.msra.mxu0 %v1728
    %1914 = vmatprep.subr.mxu0 0.0
    %1915 = vmatpush1.xpose.msra.mxu0 %v1731
    %1916 = vmatprep.subr.mxu0 0.0
    %1917 = vmatpush1.xpose.msra.mxu0 %v1734
    %1918 = vmatprep.subr.mxu0 0.0
    %1919 = vmatpush1.xpose.msra.mxu0 %v1737
    %1920 = vmatprep.subr.mxu0 0.0
    %1921 = vmatpush1.xpose.msra.mxu0 %v1740
    %1922 = vmatprep.subr.mxu0 0.0
    %1923 = vmatpush1.xpose.msra.mxu0 %v1743
    %1924 = vmatprep.subr.mxu0 0.0
    %1925 = vmatpush1.xpose.msra.mxu0 %v1746
    %1926 = vmatprep.subr.mxu0 0.0
    %1927 = vmatpush1.xpose.msra.mxu0 %v1749
    %1928 = vmatprep.subr.mxu0 0.0
    %1929 = vmatpush1.xpose.msra.mxu0 %v1752
    %1930 = vmatprep.subr.mxu0 0.0
    %1931 = vmatpush1.xpose.msra.mxu0 %v1755
    %1932 = vmatprep.subr.mxu0 0.0
    %1933 = vmatpush1.xpose.msra.mxu0 %v1758
    %1934 = vmatprep.subr.mxu0 0.0
    %1935 = vmatpush1.xpose.msra.mxu0 %v1761
    %1936 = vmatprep.subr.mxu0 0.0
    %1937 = vmatpush1.xpose.msra.mxu0 %v1764
    %1938 = vmatprep.subr.mxu0 0.0
    %1939 = vmatpush1.xpose.msra.mxu0 %v1767
    %1940 = vmatprep.subr.mxu0 0.0
    %1941 = vmatpush1.xpose.msra.mxu0 %v1770
    %1942 = vmatprep.subr.mxu0 0.0
    %1943 = vmatpush1.xpose.msra.mxu0 %v1773
    %1944 = vmatprep.subr.mxu0 0.0
    %1945 = vmatpush1.xpose.msra.mxu0 %v1776
    %1946 = vmatprep.subr.mxu0 0.0
    %1947 = vmatpush1.xpose.msra.mxu0 %v1779
    %1948 = vmatprep.subr.mxu0 0.0
    %1949 = vmatpush1.xpose.msra.mxu0 %v1782
    %1950 = vmatprep.subr.mxu0 0.0
    %1951 = vmatpush1.xpose.msra.mxu0 %v1785
    %1952 = vmatprep.subr.mxu0 0.0
    %1953 = vmatpush1.xpose.msra.mxu0 %v1788
    %1954 = vmatprep.subr.mxu0 0.0
    %1955 = vmatpush1.xpose.msra.mxu0 %v1791
    %1956 = vmatprep.subr.mxu0 0.0
    %1957 = vmatpush1.xpose.msra.mxu0 %v1794
    %1958 = vmatprep.subr.mxu0 0.0
    %1959 = vmatpush1.xpose.msra.mxu0 %v1797
    %1960 = vmatprep.subr.mxu0 0.0
    %1961 = vmatpush1.xpose.msra.mxu0 %v1800
    %1962 = vmatprep.mubr.f32.mxu0 0.0
    %1963 = vmatmul.mubr.f32.gmra.mrb[0].mxu0 %v1701
    %v1964 = vpop.f32.mrb[0].mxu0
    %v1965 = vadd.f32 0.0, %v1964
    %v1966 = vpop.f32.mrb[0].mxu0
    %v1967 = vadd.f32 0.0, %v1966
    %1968 = vmatprep.mubr.f32.mxu0 0.0
    %1969 = vmatmul.mubr.f32.gmra.mrb[0].mxu0 %v1704
    %v1970 = vpop.f32.mrb[0].mxu0
    %v1971 = vadd.f32 0.0, %v1970
    %v1972 = vpop.f32.mrb[0].mxu0
    %v1973 = vadd.f32 0.0, %v1972
    %1974 = vdwg.mxu0
    %1975 = vmatprep.subr.mxu0 0.0
    %1976 = vmatpush1.xpose.msra.mxu0 %v1803
    %1977 = vmatprep.subr.mxu0 0.0
    %1978 = vmatpush1.xpose.msra.mxu0 %v1806
    %1979 = vmatprep.subr.mxu0 0.0
    %1980 = vmatpush1.xpose.msra.mxu0 %v1809
    %1981 = vmatprep.subr.mxu0 0.0
    %1982 = vmatpush1.xpose.msra.mxu0 %v1812
    %1983 = vmatprep.subr.mxu0 0.0
    %1984 = vmatpush1.xpose.msra.mxu0 %v1815
    %1985 = vmatprep.subr.mxu0 0.0
    %1986 = vmatpush1.xpose.msra.mxu0 %v1818
    %1987 = vmatprep.subr.mxu0 0.0
    %1988 = vmatpush1.xpose.msra.mxu0 %v1821
    %1989 = vmatprep.subr.mxu0 0.0
    %1990 = vmatpush1.xpose.msra.mxu0 %v1824
    %1991 = vmatprep.subr.mxu0 0.0
    %1992 = vmatpush1.xpose.msra.mxu0 %v1827
    %1993 = vmatprep.subr.mxu0 0.0
    %1994 = vmatpush1.xpose.msra.mxu0 %v1830
    %1995 = vmatprep.subr.mxu0 0.0
    %1996 = vmatpush1.xpose.msra.mxu0 %v1833
    %1997 = vmatprep.subr.mxu0 0.0
    %1998 = vmatpush1.xpose.msra.mxu0 %v1836
    %1999 = vmatprep.subr.mxu0 0.0
    %2000 = vmatpush1.xpose.msra.mxu0 %v1839
    %2001 = vmatprep.subr.mxu0 0.0
    %2002 = vmatpush1.xpose.msra.mxu0 %v1842
    %2003 = vmatprep.subr.mxu0 0.0
    %2004 = vmatpush1.xpose.msra.mxu0 %v1845
    %2005 = vmatprep.subr.mxu0 0.0
    %2006 = vmatpush1.xpose.msra.mxu0 %v1848
    %2007 = vmatprep.subr.mxu0 0.0
    %2008 = vmatpush1.xpose.msra.mxu0 %v1851
    %2009 = vmatprep.subr.mxu0 0.0
    %2010 = vmatpush1.xpose.msra.mxu0 %v1854
    %2011 = vmatprep.subr.mxu0 0.0
    %2012 = vmatpush1.xpose.msra.mxu0 %v1857
    %2013 = vmatprep.subr.mxu0 0.0
    %2014 = vmatpush1.xpose.msra.mxu0 %v1860
    %2015 = vmatprep.subr.mxu0 0.0
    %2016 = vmatpush1.xpose.msra.mxu0 %v1863
    %2017 = vmatprep.subr.mxu0 0.0
    %2018 = vmatpush1.xpose.msra.mxu0 %v1866
    %2019 = vmatprep.subr.mxu0 0.0
    %2020 = vmatpush1.xpose.msra.mxu0 %v1869
    %2021 = vmatprep.subr.mxu0 0.0
    %2022 = vmatpush1.xpose.msra.mxu0 %v1872
    %2023 = vmatprep.subr.mxu0 0.0
    %2024 = vmatpush1.xpose.msra.mxu0 %v1875
    %2025 = vmatprep.subr.mxu0 0.0
    %2026 = vmatpush1.xpose.msra.mxu0 %v1878
    %2027 = vmatprep.subr.mxu0 0.0
    %2028 = vmatpush1.xpose.msra.mxu0 %v1881
    %2029 = vmatprep.subr.mxu0 0.0
    %2030 = vmatpush1.xpose.msra.mxu0 %v1884
    %2031 = vmatprep.subr.mxu0 0.0
    %2032 = vmatpush1.xpose.msra.mxu0 %v1887
    %2033 = vmatprep.subr.mxu0 0.0
    %2034 = vmatpush1.xpose.msra.mxu0 %v1890
    %2035 = vmatprep.subr.mxu0 0.0
    %2036 = vmatpush1.xpose.msra.mxu0 %v1893
    %2037 = vmatprep.subr.mxu0 0.0
    %2038 = vmatpush1.xpose.msra.mxu0 %v1896
    %2039 = vmatprep.mubr.f32.mxu0 0.0
    %2040 = vmatmul.mubr.f32.gmra.mrb[0].mxu0 %v1701
    %v2041 = vpop.f32.mrb[0].mxu0
    %v2042 = vadd.f32 0.0, %v2041
    %v2043 = vpop.f32.mrb[0].mxu0
    %v2044 = vadd.f32 0.0, %v2043
    %2045 = vmatprep.mubr.f32.mxu0 0.0
    %2046 = vmatmul.mubr.f32.gmra.mrb[0].mxu0 %v1704
    %v2047 = vpop.f32.mrb[0].mxu0
    %v2048 = vadd.f32 0.0, %v2047
    %v2049 = vpop.f32.mrb[0].mxu0
    %v2050 = vadd.f32 0.0, %v2049
    %2051 = vdwg.mxu0
    %2052 = vst [vmem:[#allocation2] sm:$0xff] %v1965
    %2053 = vst [vmem:[#allocation2 + $0x8] sm:$0xff] %v1967
    %2054 = vst [vmem:[#allocation2 + $0x10] sm:$0xff] %v2042
    %2055 = vst [vmem:[#allocation2 + $0x18] sm:$0xff] %v2044
    %2056 = vst [vmem:[#allocation2 + $0x20] sm:$0x7] %v1971
    %2057 = vst [vmem:[#allocation2 + $0x28] sm:$0x7] %v1973
    %2058 = vst [vmem:[#allocation2 + $0x30] sm:$0x7] %v2048
    %2059 = vst [vmem:[#allocation2 + $0x38] sm:$0x7] %v2050
    // Predicated region
    $region26: #{tpu_custom_call.1} parent=1 // pred_check
      _
    $region27: #{tpu_custom_call.1} parent=1 // pred_check_branch
      %2061 = sbr.rel (0) target = $region29
    $region28: #{tpu_custom_call.1} parent=1 // pred_region
      %s2063 = ssub.s32 1024, 1024
      %2064 = vsyncadd [#allocation3], %s2063
      %s2065 = sshll.u32 [#allocation2], 4
      %s2066 = int_to_ptr.vmem [resolvable:$true] %s2065
      %2071 = dma.vmem_to_hbm [thread:$0]  %s2066, 1024, %s6, [#allocation3], 512, 512, 32
    $region29: #{tpu_custom_call.1} parent=1 // pred_fallthru
      _
    // Predicated region
    $region30: #{tpu_custom_call.1} parent=1 // pred_check
      _
    $region31: #{tpu_custom_call.1} parent=1 // pred_check_branch
      %2073 = sbr.rel (0) target = $region33
    $region32: #{tpu_custom_call.1} parent=1 // pred_region
      %2074 = dma.done [#allocation3], 1024
    $region33: #{tpu_custom_call.1} parent=1 // pred_fallthru
      _
    %2075 = vsyncpa [#allocation3], 1

</llo_original>
